<compile_context>
chip_gen: v7x
topology: tpu7x:2x2x1
jax: 0.10.0
libtpu: 0.0.40
codegen_flags: <defaults>
</compile_context>

<pallas_src>
import functools

import jax
import jax.numpy as jnp
import numpy as np
from jax.experimental import pallas as pl
from jax.experimental.pallas import tpu as pltpu

VMEM_LIMIT = 48 * 1024 * 1024          # safe headroom on v7x (64 MiB physical VMEM)
FUSED_STASH_BUDGET = 20 * 1024 * 1024  # f_loc stash + resident out block budget


def _round_up(x, m):
    return -(-x // m) * m


def _cbr(h_bf16, w_ref, t_ref):
    """relu(h @ W' + t): bf16 MXU matmul, f32 accumulate, f32 epilogue, bf16 result."""
    z = jnp.dot(h_bf16, w_ref[...], preferred_element_type=jnp.float32)
    return jnp.maximum(z + t_ref[...], 0.0).astype(jnp.bfloat16)


def _encode_tile(x_f32, w1, t1, w2, t2, w3, t3):
    h = _cbr(x_f32.astype(jnp.bfloat16), w1, t1)       # (TN, 64)  bf16
    h = _cbr(h, w2, t2)                                 # (TN, 128) bf16
    return _cbr(h, w3, t3)                              # (TN, 256) bf16


def _decode_tile(f_loc_bf16, shift4_f32, w4a, w5, t5, w6, t6, w7, b7):
    # decoder layer 1 (512 -> 256): concat as split matmul; the global half
    # (f_glob @ W4b + t4) is the precomputed per-batch shift4.
    z = jnp.dot(f_loc_bf16, w4a[...], preferred_element_type=jnp.float32)
    h = jnp.maximum(z + shift4_f32, 0.0).astype(jnp.bfloat16)   # (TN, 256)
    h = _cbr(h, w5, t5)                                          # (TN, 128)
    h = _cbr(h, w6, t6)                                          # (TN, 64)
    y = jnp.dot(h, w7[...], preferred_element_type=jnp.float32) + b7[...]
    return y.astype(jnp.bfloat16)                                # (TN, out_pad)


# --------------------------------------------------------------------------- #
# fused single-pass kernel: encoder + running max + (on last tile) decoder
# --------------------------------------------------------------------------- #
def fused_pointnet_kernel(pts_ref,
                          w1, t1, w2, t2, w3, t3,
                          w4a, w4b, t4, w5, t5, w6, t6, w7, b7,
                          out_ref, stash_ref, glob_ref):
    n = pl.program_id(1)
    n_tiles = pl.num_programs(1)
    TN = stash_ref.shape[1]

    f_loc = _encode_tile(pts_ref[0], w1, t1, w2, t2, w3, t3)     # (TN, 256) bf16
    stash_ref[n] = f_loc
    tile_max = jnp.max(f_loc, axis=0, keepdims=True).astype(jnp.float32)  # (1, 256)

    @pl.when(n == 0)
    def _():
        glob_ref[...] = tile_max

    @pl.when(n > 0)
    def _():
        glob_ref[...] = jnp.maximum(glob_ref[...], tile_max)

    @pl.when(n == n_tiles - 1)
    def _():
        g = glob_ref[...].astype(jnp.bfloat16)                   # (1, 256)
        shift4 = jnp.dot(g, w4b[...],
                         preferred_element_type=jnp.float32) + t4[...]   # (1, 256) f32

        @pl.loop(0, n_tiles)
        def _(i):
            y = _decode_tile(stash_ref[i], shift4,
                             w4a, w5, t5, w6, t6, w7, b7)        # (TN, out_pad) bf16
            row0 = pl.multiple_of(i * TN, TN)
            out_ref[0, pl.ds(row0, TN), :] = y


# --------------------------------------------------------------------------- #
# two-pass fallback (large N): bf16 f_loc stashed to HBM instead of recompute
# --------------------------------------------------------------------------- #
def encode_stash_kernel(pts_ref, w1, t1, w2, t2, w3, t3, floc_ref, glob_ref):
    f_loc = _encode_tile(pts_ref[0], w1, t1, w2, t2, w3, t3)     # (TN, 256) bf16
    floc_ref[0] = f_loc
    tile_max = jnp.max(f_loc, axis=0, keepdims=True).astype(jnp.float32)

    n = pl.program_id(1)

    @pl.when(n == 0)
    def _():
        glob_ref[0] = tile_max

    @pl.when(n > 0)
    def _():
        glob_ref[0] = jnp.maximum(glob_ref[0], tile_max)


def decode_kernel(floc_ref, glob_ref,
                  w4a, w4b, t4, w5, t5, w6, t6, w7, b7, out_ref):
    g = glob_ref[0].astype(jnp.bfloat16)                         # (1, 256)
    shift4 = jnp.dot(g, w4b[...],
                     preferred_element_type=jnp.float32) + t4[...]
    out_ref[0] = _decode_tile(floc_ref[0], shift4,
                              w4a, w5, t5, w6, t6, w7, b7)


# --------------------------------------------------------------------------- #
# params
# --------------------------------------------------------------------------- #
def init_params(key, out_dim):
    """Deterministic synthetic params; BN scale folded into bf16 MXU weights."""
    keys = jax.random.split(key, 32)
    ki = 0

    def nxt():
        nonlocal ki
        k = keys[ki]
        ki += 1
        return k

    def conv_w(cin, cout):
        return (jax.random.normal(nxt(), (cin, cout), jnp.float32)
                * (1.0 / np.sqrt(cin)))

    def bn(c):
        gamma = 1.0 + 0.1 * jax.random.normal(nxt(), (c,), jnp.float32)
        beta = 0.1 * jax.random.normal(nxt(), (c,), jnp.float32)
        mean = 0.1 * jax.random.normal(nxt(), (c,), jnp.float32)
        var = 1.0 + 0.1 * jax.random.uniform(nxt(), (c,), jnp.float32)
        eps = 1e-5
        scale = gamma / jnp.sqrt(var + eps)
        shift = beta - mean * scale
        return scale, shift

    params = {}

    def folded(idx, cin, cout):
        w = conv_w(cin, cout)
        s, t = bn(cout)
        params[f"w{idx}"] = (w * s[None, :]).astype(jnp.bfloat16)
        params[f"t{idx}"] = t.reshape(1, cout)          # f32 epilogue shift

    folded(1, 3, 64)
    folded(2, 64, 128)
    folded(3, 128, 256)

    # decoder layer 1 (512 -> 256): fold scale, split into local/global halves
    w4 = conv_w(512, 256)
    s4, t4 = bn(256)
    w4 = (w4 * s4[None, :]).astype(jnp.bfloat16)
    params["w4a"] = w4[:256]
    params["w4b"] = w4[256:]
    params["t4"] = t4.reshape(1, 256)

    folded(5, 256, 128)
    folded(6, 128, 64)

    # final conv: pad output channels to a lane-dense multiple of 128.
    out_pad = _round_up(max(out_dim, 1), 128)
    w7 = conv_w(64, out_dim)
    b7 = 0.01 * jax.random.normal(nxt(), (out_dim,), jnp.float32)
    params["w7"] = jnp.pad(w7, ((0, 0), (0, out_pad - out_dim))).astype(jnp.bfloat16)
    params["b7"] = jnp.pad(b7, (0, out_pad - out_dim)).reshape(1, out_pad)
    return params


# --------------------------------------------------------------------------- #
# forward
# --------------------------------------------------------------------------- #
@functools.partial(jax.jit, static_argnames=("out_dim", "tn", "force_two_pass"))
def pointnet_forward(pts, params, out_dim, tn=None, force_two_pass=False):
    B, N, _ = pts.shape
    out_pad = params["w7"].shape[1]

    # N-axis tiling: default TN = 1024 (amortizes per-grid-step overhead).
    TN = tn if tn is not None else min(1024, _round_up(max(N, 8), 8))
    TN = _round_up(TN, 8)
    n_pad = _round_up(N, TN)
    if n_pad > N:
        # edge-pad (repeat last point): duplicates never change the global max
        # and the padded output rows are sliced off below.
        # TODO(synk): degenerate N == 0 is not supported (edge-pad needs >= 1 point).
        pts = jnp.pad(pts, ((0, 0), (0, n_pad - N), (0, 0)), mode="edge")
    n_tiles = n_pad // TN

    enc_vals = [params[k] for k in ("w1", "t1", "w2", "t2", "w3", "t3")]
    dec_vals = [params[k] for k in ("w4a", "w4b", "t4", "w5", "t5", "w6", "t6",
                                    "w7", "b7")]

    def const_spec(p):
        shape = p.shape
        return pl.BlockSpec(shape, lambda b, n: (0,) * len(shape))

    pts_spec = pl.BlockSpec((1, TN, 3), lambda b, n: (b, n, 0))

    stash_bytes = n_pad * 256 * 2            # bf16 f_loc stash
    out_blk_bytes = n_pad * out_pad * 2      # bf16 resident output block
    use_fused = (not force_two_pass) and (stash_bytes + out_blk_bytes
                                          <= FUSED_STASH_BUDGET)

    if use_fused:
        out = pl.pallas_call(
            fused_pointnet_kernel,
            out_shape=jax.ShapeDtypeStruct((B, n_pad, out_pad), jnp.bfloat16),
            grid_spec=pltpu.PrefetchScalarGridSpec(
                num_scalar_prefetch=0,
                grid=(B, n_tiles),
                in_specs=[pts_spec] + [const_spec(p) for p in enc_vals + dec_vals],
                out_specs=pl.BlockSpec((1, n_pad, out_pad), lambda b, n: (b, 0, 0)),
                scratch_shapes=[pltpu.VMEM((n_tiles, TN, 256), jnp.bfloat16),
                                pltpu.VMEM((1, 256), jnp.float32)]),
            compiler_params=pltpu.CompilerParams(
                dimension_semantics=("parallel", "arbitrary"),
                vmem_limit_bytes=VMEM_LIMIT),
        )(pts, *enc_vals, *dec_vals)
    else:
        # ---- pass 1: encoder + bf16 f_loc stash to HBM + global max ---------
        floc, glob = pl.pallas_call(
            encode_stash_kernel,
            out_shape=(jax.ShapeDtypeStruct((B, n_pad, 256), jnp.bfloat16),
                       jax.ShapeDtypeStruct((B, 1, 256), jnp.float32)),
            grid_spec=pltpu.PrefetchScalarGridSpec(
                num_scalar_prefetch=0,
                grid=(B, n_tiles),
                in_specs=[pts_spec] + [const_spec(p) for p in enc_vals],
                out_specs=[pl.BlockSpec((1, TN, 256), lambda b, n: (b, n, 0)),
                           pl.BlockSpec((1, 1, 256), lambda b, n: (b, 0, 0))]),
            compiler_params=pltpu.CompilerParams(
                dimension_semantics=("parallel", "arbitrary"),
                vmem_limit_bytes=VMEM_LIMIT),
        )(pts, *enc_vals)

        # ---- pass 2: decoder over reloaded f_loc (no encoder recompute) -----
        out = pl.pallas_call(
            decode_kernel,
            out_shape=jax.ShapeDtypeStruct((B, n_pad, out_pad), jnp.bfloat16),
            grid_spec=pltpu.PrefetchScalarGridSpec(
                num_scalar_prefetch=0,
                grid=(B, n_tiles),
                in_specs=[pl.BlockSpec((1, TN, 256), lambda b, n: (b, n, 0)),
                          pl.BlockSpec((1, 1, 256), lambda b, n: (b, 0, 0))]
                         + [const_spec(p) for p in dec_vals],
                out_specs=pl.BlockSpec((1, TN, out_pad), lambda b, n: (b, n, 0))),
            compiler_params=pltpu.CompilerParams(
                dimension_semantics=("parallel", "parallel"),
                vmem_limit_bytes=VMEM_LIMIT),
        )(floc, glob, *dec_vals)

    return out[:, :N, :out_dim].astype(jnp.float32)


# --------------------------------------------------------------------------- #
# reference (same bf16-matmul / f32-accumulate math as the kernels)
# --------------------------------------------------------------------------- #
def pointnet_reference(pts, params, out_dim):
    def dot(a, w):
        return jnp.einsum("bnk,km->bnm", a.astype(jnp.bfloat16), w,
                          preferred_element_type=jnp.float32)

    def cbr(h, w, t):
        return jnp.maximum(dot(h, w) + t, 0.0).astype(jnp.bfloat16)

    h = cbr(pts, params["w1"], params["t1"])
    h = cbr(h, params["w2"], params["t2"])
    f_loc = cbr(h, params["w3"], params["t3"])
    f_glob = jnp.max(f_loc, axis=1, keepdims=True)
    z = dot(f_loc, params["w4a"]) + dot(f_glob, params["w4b"]) + params["t4"]
    h = jnp.maximum(z, 0.0).astype(jnp.bfloat16)
    h = cbr(h, params["w5"], params["t5"])
    h = cbr(h, params["w6"], params["t6"])
    y = dot(h, params["w7"]) + params["b7"]
    return y[..., :out_dim]


if __name__ == "__main__":
    B, N, out_dim = 2, 320, 16
    key = jax.random.PRNGKey(0)
    k_pts, k_par = jax.random.split(key)
    pts = jax.random.normal(k_pts, (B, N, 3), jnp.float32)
    params = init_params(k_par, out_dim)

    ref = jax.block_until_ready(pointnet_reference(pts, params, out_dim))

    # fused single-pass path (forced TN=128 -> 3 tiles, exercises the stash/max/loop)
    out_fused = jax.block_until_ready(
        pointnet_forward(pts, params, out_dim=out_dim, tn=128))
    np.testing.assert_allclose(np.asarray(out_fused), np.asarray(ref),
                               rtol=2e-2, atol=2e-2)

    # two-pass fallback path (bf16 f_loc stash to HBM, no encoder recompute)
    out_2p = jax.block_until_ready(
        pointnet_forward(pts, params, out_dim=out_dim, tn=128,
                         force_two_pass=True))
    np.testing.assert_allclose(np.asarray(out_2p), np.asarray(ref),
                               rtol=2e-2, atol=2e-2)

    print("KERNEL_OK")
</pallas_src>

<mosaic_0001>
module attributes {stable_mosaic.version = 11 : i64} {
  func.func @fused_pointnet_kernel(%arg0: i32, %arg1: i32, %arg2: memref<1x128x3xf32, #tpu.memory_space<vmem>>, %arg3: memref<3x64xbf16, #tpu.memory_space<vmem>>, %arg4: memref<1x64xf32, #tpu.memory_space<vmem>>, %arg5: memref<64x128xbf16, #tpu.memory_space<vmem>>, %arg6: memref<1x128xf32, #tpu.memory_space<vmem>>, %arg7: memref<128x256xbf16, #tpu.memory_space<vmem>>, %arg8: memref<1x256xf32, #tpu.memory_space<vmem>>, %arg9: memref<256x256xbf16, #tpu.memory_space<vmem>>, %arg10: memref<256x256xbf16, #tpu.memory_space<vmem>>, %arg11: memref<1x256xf32, #tpu.memory_space<vmem>>, %arg12: memref<256x128xbf16, #tpu.memory_space<vmem>>, %arg13: memref<1x128xf32, #tpu.memory_space<vmem>>, %arg14: memref<128x64xbf16, #tpu.memory_space<vmem>>, %arg15: memref<1x64xf32, #tpu.memory_space<vmem>>, %arg16: memref<64x128xbf16, #tpu.memory_space<vmem>>, %arg17: memref<1x128xf32, #tpu.memory_space<vmem>>, %arg18: memref<1x384x128xbf16, #tpu.memory_space<vmem>>, %arg19: memref<3x128x256xbf16, #tpu.memory_space<vmem>>, %arg20: memref<1x256xf32, #tpu.memory_space<vmem>>) attributes {dimension_semantics = [#tpu.dimension_semantics<parallel>, #tpu.dimension_semantics<arbitrary>], iteration_bounds = array<i64: 2, 3>, scalar_prefetch = 0 : i64, scratch_operands = 2 : i64, tpu.core_type = #tpu.core_type<tc>, window_params = [{transform_indices = @transform_0, window_bounds = array<i64: 1, 128, 3>}, {pipeline_mode = #tpu.pipeline_mode<synchronous>, transform_indices = @transform_1, window_bounds = array<i64: 3, 64>}, {pipeline_mode = #tpu.pipeline_mode<synchronous>, transform_indices = @transform_2, window_bounds = array<i64: 1, 64>}, {pipeline_mode = #tpu.pipeline_mode<synchronous>, transform_indices = @transform_3, window_bounds = array<i64: 64, 128>}, {pipeline_mode = #tpu.pipeline_mode<synchronous>, transform_indices = @transform_4, window_bounds = array<i64: 1, 128>}, {pipeline_mode = #tpu.pipeline_mode<synchronous>, transform_indices = @transform_5, window_bounds = array<i64: 128, 256>}, {pipeline_mode = #tpu.pipeline_mode<synchronous>, transform_indices = @transform_6, window_bounds = array<i64: 1, 256>}, {pipeline_mode = #tpu.pipeline_mode<synchronous>, transform_indices = @transform_7, window_bounds = array<i64: 256, 256>}, {pipeline_mode = #tpu.pipeline_mode<synchronous>, transform_indices = @transform_8, window_bounds = array<i64: 256, 256>}, {pipeline_mode = #tpu.pipeline_mode<synchronous>, transform_indices = @transform_9, window_bounds = array<i64: 1, 256>}, {pipeline_mode = #tpu.pipeline_mode<synchronous>, transform_indices = @transform_10, window_bounds = array<i64: 256, 128>}, {pipeline_mode = #tpu.pipeline_mode<synchronous>, transform_indices = @transform_11, window_bounds = array<i64: 1, 128>}, {pipeline_mode = #tpu.pipeline_mode<synchronous>, transform_indices = @transform_12, window_bounds = array<i64: 128, 64>}, {pipeline_mode = #tpu.pipeline_mode<synchronous>, transform_indices = @transform_13, window_bounds = array<i64: 1, 64>}, {pipeline_mode = #tpu.pipeline_mode<synchronous>, transform_indices = @transform_14, window_bounds = array<i64: 64, 128>}, {pipeline_mode = #tpu.pipeline_mode<synchronous>, transform_indices = @transform_15, window_bounds = array<i64: 1, 128>}, {transform_indices = @transform_16, window_bounds = array<i64: 1, 384, 128>}]} {
    %c0 = arith.constant 0 : index
    %c0_0 = arith.constant 0 : index
    %c0_1 = arith.constant 0 : index
    %0 = vector.load %arg2[%c0, %c0_0, %c0_1] : memref<1x128x3xf32, #tpu.memory_space<vmem>>, vector<1x128x3xf32>
    %1 = vector.shape_cast %0 : vector<1x128x3xf32> to vector<128x3xf32>
    %2 = arith.truncf %1 : vector<128x3xf32> to vector<128x3xbf16>
    %c0_2 = arith.constant 0 : index
    %c0_3 = arith.constant 0 : index
    %3 = vector.load %arg3[%c0_2, %c0_3] : memref<3x64xbf16, #tpu.memory_space<vmem>>, vector<3x64xbf16>
    %cst = arith.constant dense<0.000000e+00> : vector<128x64xf32>
    %4 = tpu.matmul %2, %3, %cst {dimension_numbers = #tpu.dot_dimension_numbers<[1], [0], [0], [1], [0, 0, 1, 1], [], []>} : vector<128x3xbf16>, vector<3x64xbf16>, vector<128x64xf32> -> vector<128x64xf32>
    %c0_4 = arith.constant 0 : index
    %c0_5 = arith.constant 0 : index
    %5 = vector.load %arg4[%c0_4, %c0_5] : memref<1x64xf32, #tpu.memory_space<vmem>>, vector<1x64xf32>
    %6 = vector.broadcast %5 : vector<1x64xf32> to vector<128x64xf32>
    %7 = arith.addf %4, %6 : vector<128x64xf32>
    %cst_6 = arith.constant 0.000000e+00 : f32
    %8 = vector.broadcast %cst_6 : f32 to vector<128x64xf32>
    %9 = arith.maximumf %7, %8 : vector<128x64xf32>
    %10 = arith.truncf %9 : vector<128x64xf32> to vector<128x64xbf16>
    %c0_7 = arith.constant 0 : index
    %c0_8 = arith.constant 0 : index
    %11 = vector.load %arg5[%c0_7, %c0_8] : memref<64x128xbf16, #tpu.memory_space<vmem>>, vector<64x128xbf16>
    %cst_9 = arith.constant dense<0.000000e+00> : vector<128x128xf32>
    %12 = tpu.matmul %10, %11, %cst_9 {dimension_numbers = #tpu.dot_dimension_numbers<[1], [0], [0], [1], [0, 0, 1, 1], [], []>} : vector<128x64xbf16>, vector<64x128xbf16>, vector<128x128xf32> -> vector<128x128xf32>
    %c0_10 = arith.constant 0 : index
    %c0_11 = arith.constant 0 : index
    %13 = vector.load %arg6[%c0_10, %c0_11] : memref<1x128xf32, #tpu.memory_space<vmem>>, vector<1x128xf32>
    %14 = vector.broadcast %13 : vector<1x128xf32> to vector<128x128xf32>
    %15 = arith.addf %12, %14 : vector<128x128xf32>
    %cst_12 = arith.constant 0.000000e+00 : f32
    %16 = vector.broadcast %cst_12 : f32 to vector<128x128xf32>
    %17 = arith.maximumf %15, %16 : vector<128x128xf32>
    %18 = arith.truncf %17 : vector<128x128xf32> to vector<128x128xbf16>
    %c0_13 = arith.constant 0 : index
    %c0_14 = arith.constant 0 : index
    %19 = vector.load %arg7[%c0_13, %c0_14] : memref<128x256xbf16, #tpu.memory_space<vmem>>, vector<128x256xbf16>
    %cst_15 = arith.constant dense<0.000000e+00> : vector<128x256xf32>
    %20 = tpu.matmul %18, %19, %cst_15 {dimension_numbers = #tpu.dot_dimension_numbers<[1], [0], [0], [1], [0, 0, 1, 1], [], []>} : vector<128x128xbf16>, vector<128x256xbf16>, vector<128x256xf32> -> vector<128x256xf32>
    %c0_16 = arith.constant 0 : index
    %c0_17 = arith.constant 0 : index
    %21 = vector.load %arg8[%c0_16, %c0_17] : memref<1x256xf32, #tpu.memory_space<vmem>>, vector<1x256xf32>
    %22 = vector.broadcast %21 : vector<1x256xf32> to vector<128x256xf32>
    %23 = arith.addf %20, %22 : vector<128x256xf32>
    %cst_18 = arith.constant 0.000000e+00 : f32
    %24 = vector.broadcast %cst_18 : f32 to vector<128x256xf32>
    %25 = arith.maximumf %23, %24 : vector<128x256xf32>
    %26 = arith.truncf %25 : vector<128x256xf32> to vector<128x256xbf16>
    %27 = arith.index_cast %arg1 : i32 to index
    %c0_19 = arith.constant 0 : index
    %c0_20 = arith.constant 0 : index
    %28 = vector.load %arg19[%27, %c0_19, %c0_20] : memref<3x128x256xbf16, #tpu.memory_space<vmem>>, vector<1x128x256xbf16>
    %29 = vector.shape_cast %28 : vector<1x128x256xbf16> to vector<128x256xbf16>
    %30 = vector.shape_cast %26 : vector<128x256xbf16> to vector<1x128x256xbf16>
    tpu.vector_store %arg19[%27, %c0_19, %c0_20], %30 {strides = array<i32>} : memref<3x128x256xbf16, #tpu.memory_space<vmem>>, vector<1x128x256xbf16>,
    %cst_21 = arith.constant dense<0xFF80> : vector<256xbf16>
    %31 = vector.multi_reduction <maximumf>, %26, %cst_21 [0] : vector<128x256xbf16> to vector<256xbf16>
    %32 = vector.shape_cast %31 : vector<256xbf16> to vector<1x256xbf16>
    %33 = arith.extf %32 : vector<1x256xbf16> to vector<1x256xf32>
    %c0_i32 = arith.constant 0 : i32
    %34 = arith.cmpi eq, %arg1, %c0_i32 : i32
    %35 = arith.extui %34 : i1 to i32
    %c0_i32_22 = arith.constant 0 : i32
    %36 = arith.cmpi ne, %35, %c0_i32_22 : i32
    scf.if %36 {
      %c0_26 = arith.constant 0 : index
      %c0_27 = arith.constant 0 : index
      %43 = vector.load %arg20[%c0_26, %c0_27] : memref<1x256xf32, #tpu.memory_space<vmem>>, vector<1x256xf32>
      tpu.vector_store %arg20[%c0_26, %c0_27], %33 {strides = array<i32>} : memref<1x256xf32, #tpu.memory_space<vmem>>, vector<1x256xf32>,
    } else {
    }
    %c0_i32_23 = arith.constant 0 : i32
    %37 = arith.cmpi sgt, %arg1, %c0_i32_23 : i32
    %38 = arith.extui %37 : i1 to i32
    %c0_i32_24 = arith.constant 0 : i32
    %39 = arith.cmpi ne, %38, %c0_i32_24 : i32
    scf.if %39 {
      %c0_26 = arith.constant 0 : index
      %c0_27 = arith.constant 0 : index
      %43 = vector.load %arg20[%c0_26, %c0_27] : memref<1x256xf32, #tpu.memory_space<vmem>>, vector<1x256xf32>
      %44 = arith.maximumf %43, %33 : vector<1x256xf32>
      %c0_28 = arith.constant 0 : index
      %c0_29 = arith.constant 0 : index
      %45 = vector.load %arg20[%c0_28, %c0_29] : memref<1x256xf32, #tpu.memory_space<vmem>>, vector<1x256xf32>
      tpu.vector_store %arg20[%c0_28, %c0_29], %44 {strides = array<i32>} : memref<1x256xf32, #tpu.memory_space<vmem>>, vector<1x256xf32>,
    } else {
    }
    %c2_i32 = arith.constant 2 : i32
    %40 = arith.cmpi eq, %arg1, %c2_i32 : i32
    %41 = arith.extui %40 : i1 to i32
    %c0_i32_25 = arith.constant 0 : i32
    %42 = arith.cmpi ne, %41, %c0_i32_25 : i32
    scf.if %42 {
      %c0_26 = arith.constant 0 : index
      %c0_27 = arith.constant 0 : index
      %43 = vector.load %arg20[%c0_26, %c0_27] : memref<1x256xf32, #tpu.memory_space<vmem>>, vector<1x256xf32>
      %44 = arith.truncf %43 : vector<1x256xf32> to vector<1x256xbf16>
      %c0_28 = arith.constant 0 : index
      %c0_29 = arith.constant 0 : index
      %45 = vector.load %arg10[%c0_28, %c0_29] : memref<256x256xbf16, #tpu.memory_space<vmem>>, vector<256x256xbf16>
      %cst_30 = arith.constant dense<0.000000e+00> : vector<1x256xf32>
      %46 = tpu.matmul %44, %45, %cst_30 {dimension_numbers = #tpu.dot_dimension_numbers<[1], [0], [0], [1], [0, 0, 1, 1], [], []>} : vector<1x256xbf16>, vector<256x256xbf16>, vector<1x256xf32> -> vector<1x256xf32>
      %c0_31 = arith.constant 0 : index
      %c0_32 = arith.constant 0 : index
      %47 = vector.load %arg11[%c0_31, %c0_32] : memref<1x256xf32, #tpu.memory_space<vmem>>, vector<1x256xf32>
      %48 = arith.addf %46, %47 : vector<1x256xf32>
      %c0_i32_33 = arith.constant 0 : i32
      %c3_i32 = arith.constant 3 : i32
      %49 = arith.addi %c0_i32_33, %c3_i32 : i32
      %c1_i32 = arith.constant 1 : i32
      scf.for %arg21 = %c0_i32_33 to %49 step %c1_i32  : i32 {
        %c1_i32_35 = arith.constant 1 : i32
        %50 = arith.muli %arg21, %c1_i32_35 : i32
        %c0_i32_36 = arith.constant 0 : i32
        %51 = arith.addi %c0_i32_36, %50 : i32
        %52 = arith.index_cast %51 : i32 to index
        %c0_37 = arith.constant 0 : index
        %c0_38 = arith.constant 0 : index
        %53 = vector.load %arg19[%52, %c0_37, %c0_38] : memref<3x128x256xbf16, #tpu.memory_space<vmem>>, vector<1x128x256xbf16>
        %54 = vector.shape_cast %53 : vector<1x128x256xbf16> to vector<128x256xbf16>
        %c0_39 = arith.constant 0 : index
        %c0_40 = arith.constant 0 : index
        %55 = vector.load %arg9[%c0_39, %c0_40] : memref<256x256xbf16, #tpu.memory_space<vmem>>, vector<256x256xbf16>
        %cst_41 = arith.constant dense<0.000000e+00> : vector<128x256xf32>
        %56 = tpu.matmul %54, %55, %cst_41 {dimension_numbers = #tpu.dot_dimension_numbers<[1], [0], [0], [1], [0, 0, 1, 1], [], []>} : vector<128x256xbf16>, vector<256x256xbf16>, vector<128x256xf32> -> vector<128x256xf32>
        %57 = vector.broadcast %48 : vector<1x256xf32> to vector<128x256xf32>
        %58 = arith.addf %56, %57 : vector<128x256xf32>
        %cst_42 = arith.constant 0.000000e+00 : f32
        %59 = vector.broadcast %cst_42 : f32 to vector<128x256xf32>
        %60 = arith.maximumf %58, %59 : vector<128x256xf32>
        %61 = arith.truncf %60 : vector<128x256xf32> to vector<128x256xbf16>
        %c0_43 = arith.constant 0 : index
        %c0_44 = arith.constant 0 : index
        %62 = vector.load %arg12[%c0_43, %c0_44] : memref<256x128xbf16, #tpu.memory_space<vmem>>, vector<256x128xbf16>
        %cst_45 = arith.constant dense<0.000000e+00> : vector<128x128xf32>
        %63 = tpu.matmul %61, %62, %cst_45 {dimension_numbers = #tpu.dot_dimension_numbers<[1], [0], [0], [1], [0, 0, 1, 1], [], []>} : vector<128x256xbf16>, vector<256x128xbf16>, vector<128x128xf32> -> vector<128x128xf32>
        %c0_46 = arith.constant 0 : index
        %c0_47 = arith.constant 0 : index
        %64 = vector.load %arg13[%c0_46, %c0_47] : memref<1x128xf32, #tpu.memory_space<vmem>>, vector<1x128xf32>
        %65 = vector.broadcast %64 : vector<1x128xf32> to vector<128x128xf32>
        %66 = arith.addf %63, %65 : vector<128x128xf32>
        %cst_48 = arith.constant 0.000000e+00 : f32
        %67 = vector.broadcast %cst_48 : f32 to vector<128x128xf32>
        %68 = arith.maximumf %66, %67 : vector<128x128xf32>
        %69 = arith.truncf %68 : vector<128x128xf32> to vector<128x128xbf16>
        %c0_49 = arith.constant 0 : index
        %c0_50 = arith.constant 0 : index
        %70 = vector.load %arg14[%c0_49, %c0_50] : memref<128x64xbf16, #tpu.memory_space<vmem>>, vector<128x64xbf16>
        %cst_51 = arith.constant dense<0.000000e+00> : vector<128x64xf32>
        %71 = tpu.matmul %69, %70, %cst_51 {dimension_numbers = #tpu.dot_dimension_numbers<[1], [0], [0], [1], [0, 0, 1, 1], [], []>} : vector<128x128xbf16>, vector<128x64xbf16>, vector<128x64xf32> -> vector<128x64xf32>
        %c0_52 = arith.constant 0 : index
        %c0_53 = arith.constant 0 : index
        %72 = vector.load %arg15[%c0_52, %c0_53] : memref<1x64xf32, #tpu.memory_space<vmem>>, vector<1x64xf32>
        %73 = vector.broadcast %72 : vector<1x64xf32> to vector<128x64xf32>
        %74 = arith.addf %71, %73 : vector<128x64xf32>
        %cst_54 = arith.constant 0.000000e+00 : f32
        %75 = vector.broadcast %cst_54 : f32 to vector<128x64xf32>
        %76 = arith.maximumf %74, %75 : vector<128x64xf32>
        %77 = arith.truncf %76 : vector<128x64xf32> to vector<128x64xbf16>
        %c0_55 = arith.constant 0 : index
        %c0_56 = arith.constant 0 : index
        %78 = vector.load %arg16[%c0_55, %c0_56] : memref<64x128xbf16, #tpu.memory_space<vmem>>, vector<64x128xbf16>
        %cst_57 = arith.constant dense<0.000000e+00> : vector<128x128xf32>
        %79 = tpu.matmul %77, %78, %cst_57 {dimension_numbers = #tpu.dot_dimension_numbers<[1], [0], [0], [1], [0, 0, 1, 1], [], []>} : vector<128x64xbf16>, vector<64x128xbf16>, vector<128x128xf32> -> vector<128x128xf32>
        %c0_58 = arith.constant 0 : index
        %c0_59 = arith.constant 0 : index
        %80 = vector.load %arg17[%c0_58, %c0_59] : memref<1x128xf32, #tpu.memory_space<vmem>>, vector<1x128xf32>
        %81 = vector.broadcast %80 : vector<1x128xf32> to vector<128x128xf32>
        %82 = arith.addf %79, %81 : vector<128x128xf32>
        %83 = arith.truncf %82 : vector<128x128xf32> to vector<128x128xbf16>
        %c128_i32 = arith.constant 128 : i32
        %84 = arith.muli %51, %c128_i32 : i32
        %85 = tpu.assume_multiple %84, 128 : i32
        %c0_60 = arith.constant 0 : index
        %86 = arith.index_cast %85 : i32 to index
        %c0_61 = arith.constant 0 : index
        %87 = vector.load %arg18[%c0_60, %86, %c0_61] : memref<1x384x128xbf16, #tpu.memory_space<vmem>>, vector<1x128x128xbf16>
        %88 = vector.shape_cast %87 : vector<1x128x128xbf16> to vector<128x128xbf16>
        %89 = vector.shape_cast %83 : vector<128x128xbf16> to vector<1x128x128xbf16>
        tpu.vector_store %arg18[%c0_60, %86, %c0_61], %89 {strides = array<i32>} : memref<1x384x128xbf16, #tpu.memory_space<vmem>>, vector<1x128x128xbf16>,
      }
      %c3_i32_34 = arith.constant 3 : i32
    } else {
    }
    return
  }
  func.func @transform_0(%arg0: i32, %arg1: i32) -> (i32, i32, i32) {
    %c0_i32 = arith.constant 0 : i32
    %c0_i32_0 = arith.constant 0 : i32
    return %arg0, %arg1, %c0_i32 : i32, i32, i32
  }
  func.func @transform_1(%arg0: i32, %arg1: i32) -> (i32, i32) {
    %c0_i32 = arith.constant 0 : i32
    %c0_i32_0 = arith.constant 0 : i32
    %c0_i32_1 = arith.constant 0 : i32
    return %c0_i32, %c0_i32_0 : i32, i32
  }
  func.func @transform_2(%arg0: i32, %arg1: i32) -> (i32, i32) {
    %c0_i32 = arith.constant 0 : i32
    %c0_i32_0 = arith.constant 0 : i32
    %c0_i32_1 = arith.constant 0 : i32
    return %c0_i32, %c0_i32_0 : i32, i32
  }
  func.func @transform_3(%arg0: i32, %arg1: i32) -> (i32, i32) {
    %c0_i32 = arith.constant 0 : i32
    %c0_i32_0 = arith.constant 0 : i32
    %c0_i32_1 = arith.constant 0 : i32
    return %c0_i32, %c0_i32_0 : i32, i32
  }
  func.func @transform_4(%arg0: i32, %arg1: i32) -> (i32, i32) {
    %c0_i32 = arith.constant 0 : i32
    %c0_i32_0 = arith.constant 0 : i32
    %c0_i32_1 = arith.constant 0 : i32
    return %c0_i32, %c0_i32_0 : i32, i32
  }
  func.func @transform_5(%arg0: i32, %arg1: i32) -> (i32, i32) {
    %c0_i32 = arith.constant 0 : i32
    %c0_i32_0 = arith.constant 0 : i32
    %c0_i32_1 = arith.constant 0 : i32
    return %c0_i32, %c0_i32_0 : i32, i32
  }
  func.func @transform_6(%arg0: i32, %arg1: i32) -> (i32, i32) {
    %c0_i32 = arith.constant 0 : i32
    %c0_i32_0 = arith.constant 0 : i32
    %c0_i32_1 = arith.constant 0 : i32
    return %c0_i32, %c0_i32_0 : i32, i32
  }
  func.func @transform_7(%arg0: i32, %arg1: i32) -> (i32, i32) {
    %c0_i32 = arith.constant 0 : i32
    %c0_i32_0 = arith.constant 0 : i32
    %c0_i32_1 = arith.constant 0 : i32
    return %c0_i32, %c0_i32_0 : i32, i32
  }
  func.func @transform_8(%arg0: i32, %arg1: i32) -> (i32, i32) {
    %c0_i32 = arith.constant 0 : i32
    %c0_i32_0 = arith.constant 0 : i32
    %c0_i32_1 = arith.constant 0 : i32
    return %c0_i32, %c0_i32_0 : i32, i32
  }
  func.func @transform_9(%arg0: i32, %arg1: i32) -> (i32, i32) {
    %c0_i32 = arith.constant 0 : i32
    %c0_i32_0 = arith.constant 0 : i32
    %c0_i32_1 = arith.constant 0 : i32
    return %c0_i32, %c0_i32_0 : i32, i32
  }
  func.func @transform_10(%arg0: i32, %arg1: i32) -> (i32, i32) {
    %c0_i32 = arith.constant 0 : i32
    %c0_i32_0 = arith.constant 0 : i32
    %c0_i32_1 = arith.constant 0 : i32
    return %c0_i32, %c0_i32_0 : i32, i32
  }
  func.func @transform_11(%arg0: i32, %arg1: i32) -> (i32, i32) {
    %c0_i32 = arith.constant 0 : i32
    %c0_i32_0 = arith.constant 0 : i32
    %c0_i32_1 = arith.constant 0 : i32
    return %c0_i32, %c0_i32_0 : i32, i32
  }
  func.func @transform_12(%arg0: i32, %arg1: i32) -> (i32, i32) {
    %c0_i32 = arith.constant 0 : i32
    %c0_i32_0 = arith.constant 0 : i32
    %c0_i32_1 = arith.constant 0 : i32
    return %c0_i32, %c0_i32_0 : i32, i32
  }
  func.func @transform_13(%arg0: i32, %arg1: i32) -> (i32, i32) {
    %c0_i32 = arith.constant 0 : i32
    %c0_i32_0 = arith.constant 0 : i32
    %c0_i32_1 = arith.constant 0 : i32
    return %c0_i32, %c0_i32_0 : i32, i32
  }
  func.func @transform_14(%arg0: i32, %arg1: i32) -> (i32, i32) {
    %c0_i32 = arith.constant 0 : i32
    %c0_i32_0 = arith.constant 0 : i32
    %c0_i32_1 = arith.constant 0 : i32
    return %c0_i32, %c0_i32_0 : i32, i32
  }
  func.func @transform_15(%arg0: i32, %arg1: i32) -> (i32, i32) {
    %c0_i32 = arith.constant 0 : i32
    %c0_i32_0 = arith.constant 0 : i32
    %c0_i32_1 = arith.constant 0 : i32
    return %c0_i32, %c0_i32_0 : i32, i32
  }
  func.func @transform_16(%arg0: i32, %arg1: i32) -> (i32, i32, i32) {
    %c0_i32 = arith.constant 0 : i32
    %c0_i32_0 = arith.constant 0 : i32
    %c0_i32_1 = arith.constant 0 : i32
    return %arg0, %c0_i32, %c0_i32_0 : i32, i32, i32
  }
}

</mosaic_0001>

<llo_original>
// kernel: pointnet_forward.1
$region0: #{pointnet_forward.1}
  #allocation0 [shape = 'u32[]', space=smem, size = 0x4, offset = 0x4, fixed_abs, tag = 'smem constant byte address 0x4 - core index']
  #allocation1 [shape = 'u32[144,128]{1,0:T(1,128)}', space=vmem, size = 0x12000, scoped, tag = 'internal scratch']
  #allocation2 [shape = 'bf16[3,128,256]{2,1,0:T(16,128)(2,1)}', space=vmem, size = 0x30000, scoped, tag = 'scratch operand']
  #allocation3 [shape = 'f32[1,256]{1,0:T(1,128)}', space=vmem, size = 0x400, scoped, tag = 'scratch operand']
  %s0 = inlined_call_operand.vmem [shape: f32[2,384,3], index: 0, kind: input, shape index: {}]
  %s1 = inlined_call_operand.vmem [shape: bf16[3,64], index: 1, kind: input, shape index: {}]
  %s2 = inlined_call_operand.vmem [shape: f32[1,64], index: 2, kind: input, shape index: {}]
  %s3 = inlined_call_operand.vmem [shape: bf16[64,128], index: 3, kind: input, shape index: {}]
  %s4 = inlined_call_operand.vmem [shape: f32[1,128], index: 4, kind: input, shape index: {}]
  %s5 = inlined_call_operand.vmem [shape: bf16[128,256], index: 5, kind: input, shape index: {}]
  %s6 = inlined_call_operand.vmem [shape: f32[1,256], index: 6, kind: input, shape index: {}]
  %s7 = inlined_call_operand.vmem [shape: bf16[256,256], index: 7, kind: input, shape index: {}]
  %s8 = inlined_call_operand.vmem [shape: bf16[256,256], index: 8, kind: input, shape index: {}]
  %s9 = inlined_call_operand.vmem [shape: f32[1,256], index: 9, kind: input, shape index: {}]
  %s10 = inlined_call_operand.vmem [shape: bf16[256,128], index: 10, kind: input, shape index: {}]
  %s11 = inlined_call_operand.vmem [shape: f32[1,128], index: 11, kind: input, shape index: {}]
  %s12 = inlined_call_operand.vmem [shape: bf16[128,64], index: 12, kind: input, shape index: {}]
  %s13 = inlined_call_operand.vmem [shape: f32[1,64], index: 13, kind: input, shape index: {}]
  %s14 = inlined_call_operand.vmem [shape: bf16[64,128], index: 14, kind: input, shape index: {}]
  %s15 = inlined_call_operand.vmem [shape: f32[1,128], index: 15, kind: input, shape index: {}]
  %s16 = inlined_call_operand.vmem [shape: bf16[2,384,128], index: 16, kind: output, shape index: {}]
  %s17 = sld [smem:[#allocation0]]
  $region116: #{pointnet_forward.1} parent=0
    _
  %s19 = ssub.s32 1, %s17
  %s20 = scalar_select 0, %s19, %s17
  loop: start=0, step=1, limit=8
  $region2: #{pointnet_forward.1} parent=0 // loop_pre_header
    _
  $region3: #{pointnet_forward.1} parent=0 // loop_header
    %s22 = sphi 0, %s26
    %p23 = scmp.ge.s32.totalorder %s22, 8
    %s29 = sphi 0, %s41
    %s30 = sphi 0, %s37
    %s31 = sphi 0, %s29
    %s32 = sphi 0, %s30
    %s33 = sphi 0, %s31
    %s34 = sphi 0, %s32
    %s46 = sphi 0, %s48
    %s49 = sphi 0, %s46
    %s50 = sphi 0, %s49
    %s66 = sphi 0, %s50
    %s70 = sphi 0, %s70
    %s72 = sphi 0, %s70
    %s73 = sphi 0, %s72
    %s87 = sphi 0, %s73
    %s91 = sphi 0, %s91
    %s93 = sphi 0, %s91
    %s94 = sphi 0, %s93
    %s108 = sphi 0, %s94
    %s112 = sphi 0, %s112
    %s114 = sphi 0, %s112
    %s115 = sphi 0, %s114
    %s129 = sphi 0, %s115
    %s133 = sphi 0, %s133
    %s135 = sphi 0, %s133
    %s136 = sphi 0, %s135
    %s150 = sphi 0, %s136
    %s154 = sphi 0, %s154
    %s156 = sphi 0, %s154
    %s157 = sphi 0, %s156
    %s171 = sphi 0, %s157
    %s175 = sphi 0, %s175
    %s177 = sphi 0, %s175
    %s178 = sphi 0, %s177
    %s192 = sphi 0, %s178
    %s196 = sphi 0, %s196
    %s198 = sphi 0, %s196
    %s199 = sphi 0, %s198
    %s213 = sphi 0, %s199
    %s217 = sphi 0, %s217
    %s219 = sphi 0, %s217
    %s220 = sphi 0, %s219
    %s234 = sphi 0, %s220
    %s238 = sphi 0, %s238
    %s240 = sphi 0, %s238
    %s241 = sphi 0, %s240
    %s255 = sphi 0, %s241
    %s259 = sphi 0, %s259
    %s261 = sphi 0, %s259
    %s262 = sphi 0, %s261
    %s276 = sphi 0, %s262
    %s280 = sphi 0, %s280
    %s282 = sphi 0, %s280
    %s283 = sphi 0, %s282
    %s297 = sphi 0, %s283
    %s301 = sphi 0, %s301
    %s303 = sphi 0, %s301
    %s304 = sphi 0, %s303
    %s318 = sphi 0, %s304
    %s322 = sphi 0, %s322
    %s324 = sphi 0, %s322
    %s325 = sphi 0, %s324
    %s339 = sphi 0, %s325
    %s343 = sphi 0, %s343
    %s345 = sphi 0, %s343
    %s346 = sphi 0, %s345
    %s360 = sphi 0, %s346
    %s364 = sphi 0, %s364
    %s366 = sphi 0, %s364
    %s367 = sphi 0, %s366
    %s381 = sphi 0, %s367
    %s387 = sphi 0, %s389
    %s390 = sphi 0, %s387
    %s391 = sphi 0, %s390
    %s407 = sphi 0, %s391
  $region4: #{pointnet_forward.1} parent=0 // loop_header_branch
    %25 = sbr.rel (%p23) target = $region8
  $region5: #{pointnet_forward.1} parent=0 // loop_body
    %s27 = ssub.s32 %s22, 1
    %s28 = ssub.s32 %s22, 2
    %s35 = sadd.s32 1, %s30
    %p36 = scmp.ge.s32.totalorder %s35, 3
    %s37 = scalar_select %p36, 0, %s35
    %s38 = sadd.s32 1, %s29
    %s39 = scalar_select %p36, %s38, %s29
    %p40 = scmp.ge.s32.totalorder %s39, 2
    %s41 = scalar_select %p40, 0, %s39
    %s42 = ssub.s32 %s29, %s41
    %s43 = ssub.s32 %s30, %s37
    %s44 = sor.u32 %s42, %s43
    %p45 = scmp.eq.s32.totalorder %s44, 0
    %s47 = sadd.s32 %s46, 1
    %s48 = scalar_select %p45, %s46, %s47
    %p51 = pneg %p45
    %p52 = scmp.eq.s32.totalorder %s22, 5
    %p53 = por %p51, %p52
    %p54 = scmp.ne.s32.totalorder %s46, %s49
    %p55 = scmp.eq.s32.totalorder %s22, 0
    %p56 = por %p54, %p55
    %p57 = scmp.ne.s32.totalorder %s46, %s49
    %p58 = scmp.eq.s32.totalorder %s27, 5
    %p59 = por %p57, %p58
    %p60 = scmp.ne.s32.totalorder %s49, %s50
    %p61 = scmp.eq.s32.totalorder %s27, 0
    %p62 = por %p60, %p61
    %p63 = scmp.ne.s32.totalorder %s49, %s50
    %p64 = scmp.eq.s32.totalorder %s28, 5
    %p65 = por %p63, %p64
    %p67 = scmp.ne.s32.totalorder %s50, %s66
    %p68 = scmp.eq.s32.totalorder %s28, 0
    %p69 = por %p67, %p68
    %s71 = sadd.s32 %s70, 1
    %p74 = scmp.eq.s32.totalorder %s22, 5
    %p75 = scmp.ne.s32.totalorder %s70, %s72
    %p76 = scmp.eq.s32.totalorder %s22, 0
    %p77 = por %p75, %p76
    %p78 = scmp.ne.s32.totalorder %s70, %s72
    %p79 = scmp.eq.s32.totalorder %s27, 5
    %p80 = por %p78, %p79
    %p81 = scmp.ne.s32.totalorder %s72, %s73
    %p82 = scmp.eq.s32.totalorder %s27, 0
    %p83 = por %p81, %p82
    %p84 = scmp.ne.s32.totalorder %s72, %s73
    %p85 = scmp.eq.s32.totalorder %s28, 5
    %p86 = por %p84, %p85
    %p88 = scmp.ne.s32.totalorder %s73, %s87
    %p89 = scmp.eq.s32.totalorder %s28, 0
    %p90 = por %p88, %p89
    %s92 = sadd.s32 %s91, 1
    %p95 = scmp.eq.s32.totalorder %s22, 5
    %p96 = scmp.ne.s32.totalorder %s91, %s93
    %p97 = scmp.eq.s32.totalorder %s22, 0
    %p98 = por %p96, %p97
    %p99 = scmp.ne.s32.totalorder %s91, %s93
    %p100 = scmp.eq.s32.totalorder %s27, 5
    %p101 = por %p99, %p100
    %p102 = scmp.ne.s32.totalorder %s93, %s94
    %p103 = scmp.eq.s32.totalorder %s27, 0
    %p104 = por %p102, %p103
    %p105 = scmp.ne.s32.totalorder %s93, %s94
    %p106 = scmp.eq.s32.totalorder %s28, 5
    %p107 = por %p105, %p106
    %p109 = scmp.ne.s32.totalorder %s94, %s108
    %p110 = scmp.eq.s32.totalorder %s28, 0
    %p111 = por %p109, %p110
    %s113 = sadd.s32 %s112, 1
    %p116 = scmp.eq.s32.totalorder %s22, 5
    %p117 = scmp.ne.s32.totalorder %s112, %s114
    %p118 = scmp.eq.s32.totalorder %s22, 0
    %p119 = por %p117, %p118
    %p120 = scmp.ne.s32.totalorder %s112, %s114
    %p121 = scmp.eq.s32.totalorder %s27, 5
    %p122 = por %p120, %p121
    %p123 = scmp.ne.s32.totalorder %s114, %s115
    %p124 = scmp.eq.s32.totalorder %s27, 0
    %p125 = por %p123, %p124
    %p126 = scmp.ne.s32.totalorder %s114, %s115
    %p127 = scmp.eq.s32.totalorder %s28, 5
    %p128 = por %p126, %p127
    %p130 = scmp.ne.s32.totalorder %s115, %s129
    %p131 = scmp.eq.s32.totalorder %s28, 0
    %p132 = por %p130, %p131
    %s134 = sadd.s32 %s133, 1
    %p137 = scmp.eq.s32.totalorder %s22, 5
    %p138 = scmp.ne.s32.totalorder %s133, %s135
    %p139 = scmp.eq.s32.totalorder %s22, 0
    %p140 = por %p138, %p139
    %p141 = scmp.ne.s32.totalorder %s133, %s135
    %p142 = scmp.eq.s32.totalorder %s27, 5
    %p143 = por %p141, %p142
    %p144 = scmp.ne.s32.totalorder %s135, %s136
    %p145 = scmp.eq.s32.totalorder %s27, 0
    %p146 = por %p144, %p145
    %p147 = scmp.ne.s32.totalorder %s135, %s136
    %p148 = scmp.eq.s32.totalorder %s28, 5
    %p149 = por %p147, %p148
    %p151 = scmp.ne.s32.totalorder %s136, %s150
    %p152 = scmp.eq.s32.totalorder %s28, 0
    %p153 = por %p151, %p152
    %s155 = sadd.s32 %s154, 1
    %p158 = scmp.eq.s32.totalorder %s22, 5
    %p159 = scmp.ne.s32.totalorder %s154, %s156
    %p160 = scmp.eq.s32.totalorder %s22, 0
    %p161 = por %p159, %p160
    %p162 = scmp.ne.s32.totalorder %s154, %s156
    %p163 = scmp.eq.s32.totalorder %s27, 5
    %p164 = por %p162, %p163
    %p165 = scmp.ne.s32.totalorder %s156, %s157
    %p166 = scmp.eq.s32.totalorder %s27, 0
    %p167 = por %p165, %p166
    %p168 = scmp.ne.s32.totalorder %s156, %s157
    %p169 = scmp.eq.s32.totalorder %s28, 5
    %p170 = por %p168, %p169
    %p172 = scmp.ne.s32.totalorder %s157, %s171
    %p173 = scmp.eq.s32.totalorder %s28, 0
    %p174 = por %p172, %p173
    %s176 = sadd.s32 %s175, 1
    %p179 = scmp.eq.s32.totalorder %s22, 5
    %p180 = scmp.ne.s32.totalorder %s175, %s177
    %p181 = scmp.eq.s32.totalorder %s22, 0
    %p182 = por %p180, %p181
    %p183 = scmp.ne.s32.totalorder %s175, %s177
    %p184 = scmp.eq.s32.totalorder %s27, 5
    %p185 = por %p183, %p184
    %p186 = scmp.ne.s32.totalorder %s177, %s178
    %p187 = scmp.eq.s32.totalorder %s27, 0
    %p188 = por %p186, %p187
    %p189 = scmp.ne.s32.totalorder %s177, %s178
    %p190 = scmp.eq.s32.totalorder %s28, 5
    %p191 = por %p189, %p190
    %p193 = scmp.ne.s32.totalorder %s178, %s192
    %p194 = scmp.eq.s32.totalorder %s28, 0
    %p195 = por %p193, %p194
    %s197 = sadd.s32 %s196, 1
    %p200 = scmp.eq.s32.totalorder %s22, 5
    %p201 = scmp.ne.s32.totalorder %s196, %s198
    %p202 = scmp.eq.s32.totalorder %s22, 0
    %p203 = por %p201, %p202
    %p204 = scmp.ne.s32.totalorder %s196, %s198
    %p205 = scmp.eq.s32.totalorder %s27, 5
    %p206 = por %p204, %p205
    %p207 = scmp.ne.s32.totalorder %s198, %s199
    %p208 = scmp.eq.s32.totalorder %s27, 0
    %p209 = por %p207, %p208
    %p210 = scmp.ne.s32.totalorder %s198, %s199
    %p211 = scmp.eq.s32.totalorder %s28, 5
    %p212 = por %p210, %p211
    %p214 = scmp.ne.s32.totalorder %s199, %s213
    %p215 = scmp.eq.s32.totalorder %s28, 0
    %p216 = por %p214, %p215
    %s218 = sadd.s32 %s217, 1
    %p221 = scmp.eq.s32.totalorder %s22, 5
    %p222 = scmp.ne.s32.totalorder %s217, %s219
    %p223 = scmp.eq.s32.totalorder %s22, 0
    %p224 = por %p222, %p223
    %p225 = scmp.ne.s32.totalorder %s217, %s219
    %p226 = scmp.eq.s32.totalorder %s27, 5
    %p227 = por %p225, %p226
    %p228 = scmp.ne.s32.totalorder %s219, %s220
    %p229 = scmp.eq.s32.totalorder %s27, 0
    %p230 = por %p228, %p229
    %p231 = scmp.ne.s32.totalorder %s219, %s220
    %p232 = scmp.eq.s32.totalorder %s28, 5
    %p233 = por %p231, %p232
    %p235 = scmp.ne.s32.totalorder %s220, %s234
    %p236 = scmp.eq.s32.totalorder %s28, 0
    %p237 = por %p235, %p236
    %s239 = sadd.s32 %s238, 1
    %p242 = scmp.eq.s32.totalorder %s22, 5
    %p243 = scmp.ne.s32.totalorder %s238, %s240
    %p244 = scmp.eq.s32.totalorder %s22, 0
    %p245 = por %p243, %p244
    %p246 = scmp.ne.s32.totalorder %s238, %s240
    %p247 = scmp.eq.s32.totalorder %s27, 5
    %p248 = por %p246, %p247
    %p249 = scmp.ne.s32.totalorder %s240, %s241
    %p250 = scmp.eq.s32.totalorder %s27, 0
    %p251 = por %p249, %p250
    %p252 = scmp.ne.s32.totalorder %s240, %s241
    %p253 = scmp.eq.s32.totalorder %s28, 5
    %p254 = por %p252, %p253
    %p256 = scmp.ne.s32.totalorder %s241, %s255
    %p257 = scmp.eq.s32.totalorder %s28, 0
    %p258 = por %p256, %p257
    %s260 = sadd.s32 %s259, 1
    %p263 = scmp.eq.s32.totalorder %s22, 5
    %p264 = scmp.ne.s32.totalorder %s259, %s261
    %p265 = scmp.eq.s32.totalorder %s22, 0
    %p266 = por %p264, %p265
    %p267 = scmp.ne.s32.totalorder %s259, %s261
    %p268 = scmp.eq.s32.totalorder %s27, 5
    %p269 = por %p267, %p268
    %p270 = scmp.ne.s32.totalorder %s261, %s262
    %p271 = scmp.eq.s32.totalorder %s27, 0
    %p272 = por %p270, %p271
    %p273 = scmp.ne.s32.totalorder %s261, %s262
    %p274 = scmp.eq.s32.totalorder %s28, 5
    %p275 = por %p273, %p274
    %p277 = scmp.ne.s32.totalorder %s262, %s276
    %p278 = scmp.eq.s32.totalorder %s28, 0
    %p279 = por %p277, %p278
    %s281 = sadd.s32 %s280, 1
    %p284 = scmp.eq.s32.totalorder %s22, 5
    %p285 = scmp.ne.s32.totalorder %s280, %s282
    %p286 = scmp.eq.s32.totalorder %s22, 0
    %p287 = por %p285, %p286
    %p288 = scmp.ne.s32.totalorder %s280, %s282
    %p289 = scmp.eq.s32.totalorder %s27, 5
    %p290 = por %p288, %p289
    %p291 = scmp.ne.s32.totalorder %s282, %s283
    %p292 = scmp.eq.s32.totalorder %s27, 0
    %p293 = por %p291, %p292
    %p294 = scmp.ne.s32.totalorder %s282, %s283
    %p295 = scmp.eq.s32.totalorder %s28, 5
    %p296 = por %p294, %p295
    %p298 = scmp.ne.s32.totalorder %s283, %s297
    %p299 = scmp.eq.s32.totalorder %s28, 0
    %p300 = por %p298, %p299
    %s302 = sadd.s32 %s301, 1
    %p305 = scmp.eq.s32.totalorder %s22, 5
    %p306 = scmp.ne.s32.totalorder %s301, %s303
    %p307 = scmp.eq.s32.totalorder %s22, 0
    %p308 = por %p306, %p307
    %p309 = scmp.ne.s32.totalorder %s301, %s303
    %p310 = scmp.eq.s32.totalorder %s27, 5
    %p311 = por %p309, %p310
    %p312 = scmp.ne.s32.totalorder %s303, %s304
    %p313 = scmp.eq.s32.totalorder %s27, 0
    %p314 = por %p312, %p313
    %p315 = scmp.ne.s32.totalorder %s303, %s304
    %p316 = scmp.eq.s32.totalorder %s28, 5
    %p317 = por %p315, %p316
    %p319 = scmp.ne.s32.totalorder %s304, %s318
    %p320 = scmp.eq.s32.totalorder %s28, 0
    %p321 = por %p319, %p320
    %s323 = sadd.s32 %s322, 1
    %p326 = scmp.eq.s32.totalorder %s22, 5
    %p327 = scmp.ne.s32.totalorder %s322, %s324
    %p328 = scmp.eq.s32.totalorder %s22, 0
    %p329 = por %p327, %p328
    %p330 = scmp.ne.s32.totalorder %s322, %s324
    %p331 = scmp.eq.s32.totalorder %s27, 5
    %p332 = por %p330, %p331
    %p333 = scmp.ne.s32.totalorder %s324, %s325
    %p334 = scmp.eq.s32.totalorder %s27, 0
    %p335 = por %p333, %p334
    %p336 = scmp.ne.s32.totalorder %s324, %s325
    %p337 = scmp.eq.s32.totalorder %s28, 5
    %p338 = por %p336, %p337
    %p340 = scmp.ne.s32.totalorder %s325, %s339
    %p341 = scmp.eq.s32.totalorder %s28, 0
    %p342 = por %p340, %p341
    %s344 = sadd.s32 %s343, 1
    %p347 = scmp.eq.s32.totalorder %s22, 5
    %p348 = scmp.ne.s32.totalorder %s343, %s345
    %p349 = scmp.eq.s32.totalorder %s22, 0
    %p350 = por %p348, %p349
    %p351 = scmp.ne.s32.totalorder %s343, %s345
    %p352 = scmp.eq.s32.totalorder %s27, 5
    %p353 = por %p351, %p352
    %p354 = scmp.ne.s32.totalorder %s345, %s346
    %p355 = scmp.eq.s32.totalorder %s27, 0
    %p356 = por %p354, %p355
    %p357 = scmp.ne.s32.totalorder %s345, %s346
    %p358 = scmp.eq.s32.totalorder %s28, 5
    %p359 = por %p357, %p358
    %p361 = scmp.ne.s32.totalorder %s346, %s360
    %p362 = scmp.eq.s32.totalorder %s28, 0
    %p363 = por %p361, %p362
    %s365 = sadd.s32 %s364, 1
    %p368 = scmp.eq.s32.totalorder %s22, 5
    %p369 = scmp.ne.s32.totalorder %s364, %s366
    %p370 = scmp.eq.s32.totalorder %s22, 0
    %p371 = por %p369, %p370
    %p372 = scmp.ne.s32.totalorder %s364, %s366
    %p373 = scmp.eq.s32.totalorder %s27, 5
    %p374 = por %p372, %p373
    %p375 = scmp.ne.s32.totalorder %s366, %s367
    %p376 = scmp.eq.s32.totalorder %s27, 0
    %p377 = por %p375, %p376
    %p378 = scmp.ne.s32.totalorder %s366, %s367
    %p379 = scmp.eq.s32.totalorder %s28, 5
    %p380 = por %p378, %p379
    %p382 = scmp.ne.s32.totalorder %s367, %s381
    %p383 = scmp.eq.s32.totalorder %s28, 0
    %p384 = por %p382, %p383
    %s385 = ssub.s32 %s29, %s41
    %p386 = scmp.eq.s32.totalorder %s385, 0
    %s388 = sadd.s32 %s387, 1
    %s389 = scalar_select %p386, %s387, %s388
    %p392 = pneg %p386
    %p393 = scmp.eq.s32.totalorder %s22, 5
    %p394 = por %p392, %p393
    %p395 = scmp.ne.s32.totalorder %s387, %s390
    %p396 = scmp.eq.s32.totalorder %s22, 0
    %p397 = por %p395, %p396
    %p398 = scmp.ne.s32.totalorder %s387, %s390
    %p399 = scmp.eq.s32.totalorder %s27, 5
    %p400 = por %p398, %p399
    %p401 = scmp.ne.s32.totalorder %s390, %s391
    %p402 = scmp.eq.s32.totalorder %s27, 0
    %p403 = por %p401, %p402
    %p404 = scmp.ne.s32.totalorder %s390, %s391
    %p405 = scmp.eq.s32.totalorder %s28, 5
    %p406 = por %p404, %p405
    %p408 = scmp.ne.s32.totalorder %s391, %s407
    %p409 = scmp.eq.s32.totalorder %s28, 0
    %p410 = por %p408, %p409
    %p411 = scmp.le.s32.totalorder 1, %s22
    %p412 = scmp.lt.s32.totalorder %s22, 7
    %p413 = pnand %p411, %p412
    %p414 = pneg %p413
    // Predicated region
    $region9: #{pointnet_forward.1} parent=5 // pred_check
      _
    $region10: #{pointnet_forward.1} parent=5 // pred_check_branch
      %416 = sbr.rel (%p413) target = $region12
    $region11: #{pointnet_forward.1} parent=5 // pred_region
      %s417 = ssub.s32 %s22, 1
      // Predicated region
      $region13: #{pointnet_forward.1} parent=11 // pred_check
        %p418 = pneg %p83
      $region14: #{pointnet_forward.1} parent=11 // pred_check_branch
        %420 = sbr.rel (%p418) target = $region16
      $region15: #{pointnet_forward.1} parent=11 // pred_region
        _
      $region16: #{pointnet_forward.1} parent=11 // pred_fallthru
        _
      // Predicated region
      $region17: #{pointnet_forward.1} parent=11 // pred_check
        %p421 = pneg %p104
      $region18: #{pointnet_forward.1} parent=11 // pred_check_branch
        %423 = sbr.rel (%p421) target = $region20
      $region19: #{pointnet_forward.1} parent=11 // pred_region
        _
      $region20: #{pointnet_forward.1} parent=11 // pred_fallthru
        _
      // Predicated region
      $region21: #{pointnet_forward.1} parent=11 // pred_check
        %p424 = pneg %p125
      $region22: #{pointnet_forward.1} parent=11 // pred_check_branch
        %426 = sbr.rel (%p424) target = $region24
      $region23: #{pointnet_forward.1} parent=11 // pred_region
        _
      $region24: #{pointnet_forward.1} parent=11 // pred_fallthru
        _
      // Predicated region
      $region25: #{pointnet_forward.1} parent=11 // pred_check
        %p427 = pneg %p146
      $region26: #{pointnet_forward.1} parent=11 // pred_check_branch
        %429 = sbr.rel (%p427) target = $region28
      $region27: #{pointnet_forward.1} parent=11 // pred_region
        _
      $region28: #{pointnet_forward.1} parent=11 // pred_fallthru
        _
      // Predicated region
      $region29: #{pointnet_forward.1} parent=11 // pred_check
        %p430 = pneg %p167
      $region30: #{pointnet_forward.1} parent=11 // pred_check_branch
        %432 = sbr.rel (%p430) target = $region32
      $region31: #{pointnet_forward.1} parent=11 // pred_region
        _
      $region32: #{pointnet_forward.1} parent=11 // pred_fallthru
        _
      // Predicated region
      $region33: #{pointnet_forward.1} parent=11 // pred_check
        %p433 = pneg %p188
      $region34: #{pointnet_forward.1} parent=11 // pred_check_branch
        %435 = sbr.rel (%p433) target = $region36
      $region35: #{pointnet_forward.1} parent=11 // pred_region
        _
      $region36: #{pointnet_forward.1} parent=11 // pred_fallthru
        _
      // Predicated region
      $region37: #{pointnet_forward.1} parent=11 // pred_check
        %p436 = pneg %p209
      $region38: #{pointnet_forward.1} parent=11 // pred_check_branch
        %438 = sbr.rel (%p436) target = $region40
      $region39: #{pointnet_forward.1} parent=11 // pred_region
        _
      $region40: #{pointnet_forward.1} parent=11 // pred_fallthru
        _
      // Predicated region
      $region41: #{pointnet_forward.1} parent=11 // pred_check
        %p439 = pneg %p230
      $region42: #{pointnet_forward.1} parent=11 // pred_check_branch
        %441 = sbr.rel (%p439) target = $region44
      $region43: #{pointnet_forward.1} parent=11 // pred_region
        _
      $region44: #{pointnet_forward.1} parent=11 // pred_fallthru
        _
      // Predicated region
      $region45: #{pointnet_forward.1} parent=11 // pred_check
        %p442 = pneg %p251
      $region46: #{pointnet_forward.1} parent=11 // pred_check_branch
        %444 = sbr.rel (%p442) target = $region48
      $region47: #{pointnet_forward.1} parent=11 // pred_region
        _
      $region48: #{pointnet_forward.1} parent=11 // pred_fallthru
        _
      // Predicated region
      $region49: #{pointnet_forward.1} parent=11 // pred_check
        %p445 = pneg %p272
      $region50: #{pointnet_forward.1} parent=11 // pred_check_branch
        %447 = sbr.rel (%p445) target = $region52
      $region51: #{pointnet_forward.1} parent=11 // pred_region
        _
      $region52: #{pointnet_forward.1} parent=11 // pred_fallthru
        _
      // Predicated region
      $region53: #{pointnet_forward.1} parent=11 // pred_check
        %p448 = pneg %p293
      $region54: #{pointnet_forward.1} parent=11 // pred_check_branch
        %450 = sbr.rel (%p448) target = $region56
      $region55: #{pointnet_forward.1} parent=11 // pred_region
        _
      $region56: #{pointnet_forward.1} parent=11 // pred_fallthru
        _
      // Predicated region
      $region57: #{pointnet_forward.1} parent=11 // pred_check
        %p451 = pneg %p314
      $region58: #{pointnet_forward.1} parent=11 // pred_check_branch
        %453 = sbr.rel (%p451) target = $region60
      $region59: #{pointnet_forward.1} parent=11 // pred_region
        _
      $region60: #{pointnet_forward.1} parent=11 // pred_fallthru
        _
      // Predicated region
      $region61: #{pointnet_forward.1} parent=11 // pred_check
        %p454 = pneg %p335
      $region62: #{pointnet_forward.1} parent=11 // pred_check_branch
        %456 = sbr.rel (%p454) target = $region64
      $region63: #{pointnet_forward.1} parent=11 // pred_region
        _
      $region64: #{pointnet_forward.1} parent=11 // pred_fallthru
        _
      // Predicated region
      $region65: #{pointnet_forward.1} parent=11 // pred_check
        %p457 = pneg %p356
      $region66: #{pointnet_forward.1} parent=11 // pred_check_branch
        %459 = sbr.rel (%p457) target = $region68
      $region67: #{pointnet_forward.1} parent=11 // pred_region
        _
      $region68: #{pointnet_forward.1} parent=11 // pred_fallthru
        _
      // Predicated region
      $region69: #{pointnet_forward.1} parent=11 // pred_check
        %p460 = pneg %p377
      $region70: #{pointnet_forward.1} parent=11 // pred_check_branch
        %462 = sbr.rel (%p460) target = $region72
      $region71: #{pointnet_forward.1} parent=11 // pred_region
        _
      $region72: #{pointnet_forward.1} parent=11 // pred_fallthru
        _
    $region12: #{pointnet_forward.1} parent=5 // pred_fallthru
      _
    %p463 = scmp.lt.s32.totalorder %s22, 6
    // Predicated region
    $region73: #{pointnet_forward.1} parent=5 // pred_check
      %p464 = pneg %p463
    $region74: #{pointnet_forward.1} parent=5 // pred_check_branch
      %466 = sbr.rel (%p464) target = $region76
    $region75: #{pointnet_forward.1} parent=5 // pred_region
      // Predicated region
      $region77: #{pointnet_forward.1} parent=75 // pred_check
        %p467 = pneg %p56
      $region78: #{pointnet_forward.1} parent=75 // pred_check_branch
        %469 = sbr.rel (%p467) target = $region80
      $region79: #{pointnet_forward.1} parent=75 // pred_region
        %s470 = smul.u32 16, %s30
        %p471 = scmp.lt.s32.totalorder %s29, 1
        %s472 = scalar_select %p471, %s29, 1
        %p473 = scmp.lt.s32.totalorder %s470, 47
        %s474 = scalar_select %p473, %s470, 47
        %s475 = smul.addr %s472, 48
        %s476 = sadd.s32 %s474, %s475
        %s477 = smul.addr %s476, 8
        %s478 = scalar_lea.vmem %s0, %s477
        %s479 = smul.u32 16, %s30
      $region80: #{pointnet_forward.1} parent=75 // pred_fallthru
        _
    $region76: #{pointnet_forward.1} parent=5 // pred_fallthru
      _
    %p480 = scmp.le.s32.totalorder 1, %s22
    %p481 = scmp.lt.s32.totalorder %s22, 7
    %p482 = pnand %p480, %p481
    %p483 = pneg %p482
    // Predicated region
    $region81: #{pointnet_forward.1} parent=5 // pred_check
      _
    $region82: #{pointnet_forward.1} parent=5 // pred_check_branch
      %485 = sbr.rel (%p482) target = $region84
    $region83: #{pointnet_forward.1} parent=5 // pred_region
      %s486 = ssub.s32 %s22, 1
      %s487 = smul.u32 16, %s32
      %p488 = scmp.lt.s32.totalorder %s31, 1
      %s489 = scalar_select %p488, %s31, 1
      %p490 = scmp.lt.s32.totalorder %s487, 47
      %s491 = scalar_select %p490, %s487, 47
      %s492 = smul.addr %s489, 48
      %s493 = sadd.s32 %s491, %s492
      %s494 = smul.addr %s493, 8
      %s495 = scalar_lea.vmem %s0, %s494
      %p496 = pneg %p62
      %p497 = pneg %p59
      %p498 = pneg %p83
      %p499 = pneg %p80
      %p500 = pneg %p104
      %p501 = pneg %p101
      %p502 = pneg %p125
      %p503 = pneg %p122
      %p504 = pneg %p146
      %p505 = pneg %p143
      %p506 = pneg %p167
      %p507 = pneg %p164
      %p508 = pneg %p188
      %p509 = pneg %p185
      %p510 = pneg %p209
      %p511 = pneg %p206
      %p512 = pneg %p230
      %p513 = pneg %p227
      %p514 = pneg %p251
      %p515 = pneg %p248
      %p516 = pneg %p272
      %p517 = pneg %p269
      %p518 = pneg %p293
      %p519 = pneg %p290
      %p520 = pneg %p314
      %p521 = pneg %p311
      %p522 = pneg %p335
      %p523 = pneg %p332
      %p524 = pneg %p356
      %p525 = pneg %p353
      %p526 = pneg %p377
      %p527 = pneg %p374
      %p528 = pneg %p403
      %p529 = pneg %p400
      %p530 = scmp.lt.s32.totalorder %s31, 1
      %s531 = scalar_select %p530, %s31, 1
      %s532 = smul.addr %s531, 48
      %s533 = smul.addr %s532, 4
      %s534 = scalar_lea.vmem %s16, %s533
      %s535 = smul.u32 16, %s32
      %p536 = scmp.lt.s32.totalorder %s31, 1
      %s537 = scalar_select %p536, %s31, 1
      %p538 = scmp.lt.s32.totalorder %s535, 47
      %s539 = scalar_select %p538, %s535, 47
      %s540 = smul.addr %s537, 48
      %s541 = sadd.s32 %s539, %s540
      %s542 = smul.addr %s541, 8
      %s543 = scalar_lea.vmem %s0, %s542
      %s544 = smul.u32 16, %s32
      %p545 = scmp.lt.s32.totalorder %s31, 1
      %s546 = scalar_select %p545, %s31, 1
      %s547 = smul.addr %s546, 48
      %s548 = smul.addr %s547, 4
      %s549 = scalar_lea.vmem %s16, %s548
      %v551 = vld [vmem:[%s543] sm:$0xff]
      %v552 = vld [vmem:[%s543 + $0x8] sm:$0xff]
      %v553 = vld [vmem:[%s543 + $0x10] sm:$0xff]
      %v554 = vld [vmem:[%s543 + $0x18] sm:$0xff]
      %v555 = vld [vmem:[%s543 + $0x20] sm:$0xff]
      %v556 = vld [vmem:[%s543 + $0x28] sm:$0xff]
      %v557 = vld [vmem:[%s543 + $0x30] sm:$0xff]
      %v558 = vld [vmem:[%s543 + $0x38] sm:$0xff]
      %v559 = vld [vmem:[%s543 + $0x40] sm:$0xff]
      %v560 = vld [vmem:[%s543 + $0x48] sm:$0xff]
      %v561 = vld [vmem:[%s543 + $0x50] sm:$0xff]
      %v562 = vld [vmem:[%s543 + $0x58] sm:$0xff]
      %v563 = vld [vmem:[%s543 + $0x60] sm:$0xff]
      %v564 = vld [vmem:[%s543 + $0x68] sm:$0xff]
      %v565 = vld [vmem:[%s543 + $0x70] sm:$0xff]
      %v566 = vld [vmem:[%s543 + $0x78] sm:$0xff]
      %v567 = vpack.c.bf16 %v552, %v551
      %v568 = vpack.c.bf16 %v554, %v553
      %v569 = vpack.c.bf16 %v556, %v555
      %v570 = vpack.c.bf16 %v558, %v557
      %v571 = vpack.c.bf16 %v560, %v559
      %v572 = vpack.c.bf16 %v562, %v561
      %v573 = vpack.c.bf16 %v564, %v563
      %v574 = vpack.c.bf16 %v566, %v565
      %v575 = vld [vmem:[%s1] sm:$0x3]
      %v576 = vld [vmem:[%s2] sm:$0x1]
      %v578 = vlaneseq
      %v579 = vshrl.u32 %v578, 7
      %v580 = vsub.s32 0, %v579
      %v581 = vrot.slane %v576, %v580
      %vm583 = vcmask 23552
      %v585 = vsel %vm583, %v567, 0
      %v588 = vsel %vm583, %v568, 0
      %v591 = vsel %vm583, %v569, 0
      %v594 = vsel %vm583, %v570, 0
      %v597 = vsel %vm583, %v571, 0
      %v600 = vsel %vm583, %v572, 0
      %v603 = vsel %vm583, %v573, 0
      %v606 = vsel %vm583, %v574, 0
      %vm608 = vcmask 1040384
      %vm609 = vcmask 1041408
      %v610 = vsel %vm608, 4294967295, 65535
      %v611 = vsel %vm609, %v610, 0
      %v613 = vand.u32 %v575, %v611
      %615 = vmatprep.subr.bf16.mxu0 0
      %616 = vmatpush1.bf16.msra.mxu0 %v613
      %617 = vmatprep.subr.bf16.mxu0 0
      %618 = vmatpush1.bf16.msra.mxu0 0
      %619 = vmatprep.subr.bf16.mxu0 0
      %620 = vmatpush1.bf16.msra.mxu0 0
      %621 = vmatprep.subr.bf16.mxu0 0
      %622 = vmatpush1.bf16.msra.mxu0 0
      %623 = vmatprep.subr.bf16.mxu0 0
      %624 = vmatpush1.bf16.msra.mxu0 0
      %625 = vmatprep.subr.bf16.mxu0 0
      %626 = vmatpush1.bf16.msra.mxu0 0
      %627 = vmatprep.subr.bf16.mxu0 0
      %628 = vmatpush1.bf16.msra.mxu0 0
      %629 = vmatprep.subr.bf16.mxu0 0
      %630 = vmatpush1.bf16.msra.mxu0 0
      %631 = vmatprep.subr.bf16.mxu0 0
      %632 = vmatpush1.bf16.msra.mxu0 0
      %633 = vmatprep.subr.bf16.mxu0 0
      %634 = vmatpush1.bf16.msra.mxu0 0
      %635 = vmatprep.subr.bf16.mxu0 0
      %636 = vmatpush1.bf16.msra.mxu0 0
      %637 = vmatprep.subr.bf16.mxu0 0
      %638 = vmatpush1.bf16.msra.mxu0 0
      %639 = vmatprep.subr.bf16.mxu0 0
      %640 = vmatpush1.bf16.msra.mxu0 0
      %641 = vmatprep.subr.bf16.mxu0 0
      %642 = vmatpush1.bf16.msra.mxu0 0
      %643 = vmatprep.subr.bf16.mxu0 0
      %644 = vmatpush1.bf16.msra.mxu0 0
      %645 = vmatprep.subr.bf16.mxu0 0
      %646 = vmatpush1.bf16.msra.mxu0 0
      %647 = vmatprep.mubr.bf16.mxu0 0
      %648 = vmatmul.mubr.bf16.gmra.mrb[0].mxu0 %v585
      %v649 = vpop.f32.mrb[0].mxu0
      %v650 = vadd.f32 %v581, %v649
      %v651 = vpop.f32.mrb[0].mxu0
      %v652 = vpop.f32.mrb[0].mxu0
      %v653 = vadd.f32 %v581, %v652
      %v654 = vpop.f32.mrb[0].mxu0
      %655 = vmatprep.mubr.bf16.mxu0 0
      %656 = vmatmul.mubr.bf16.gmra.mrb[0].mxu0 %v588
      %v657 = vpop.f32.mrb[0].mxu0
      %v658 = vadd.f32 %v581, %v657
      %v659 = vpop.f32.mrb[0].mxu0
      %v660 = vpop.f32.mrb[0].mxu0
      %v661 = vadd.f32 %v581, %v660
      %v662 = vpop.f32.mrb[0].mxu0
      %663 = vmatprep.mubr.bf16.mxu0 0
      %664 = vmatmul.mubr.bf16.gmra.mrb[0].mxu0 %v591
      %v665 = vpop.f32.mrb[0].mxu0
      %v666 = vadd.f32 %v581, %v665
      %v667 = vpop.f32.mrb[0].mxu0
      %v668 = vpop.f32.mrb[0].mxu0
      %v669 = vadd.f32 %v581, %v668
      %v670 = vpop.f32.mrb[0].mxu0
      %671 = vmatprep.mubr.bf16.mxu0 0
      %672 = vmatmul.mubr.bf16.gmra.mrb[0].mxu0 %v594
      %v673 = vpop.f32.mrb[0].mxu0
      %v674 = vadd.f32 %v581, %v673
      %v675 = vpop.f32.mrb[0].mxu0
      %v676 = vpop.f32.mrb[0].mxu0
      %v677 = vadd.f32 %v581, %v676
      %v678 = vpop.f32.mrb[0].mxu0
      %679 = vmatprep.mubr.bf16.mxu0 0
      %680 = vmatmul.mubr.bf16.gmra.mrb[0].mxu0 %v597
      %v681 = vpop.f32.mrb[0].mxu0
      %v682 = vadd.f32 %v581, %v681
      %v683 = vpop.f32.mrb[0].mxu0
      %v684 = vpop.f32.mrb[0].mxu0
      %v685 = vadd.f32 %v581, %v684
      %v686 = vpop.f32.mrb[0].mxu0
      %687 = vmatprep.mubr.bf16.mxu0 0
      %688 = vmatmul.mubr.bf16.gmra.mrb[0].mxu0 %v600
      %v689 = vpop.f32.mrb[0].mxu0
      %v690 = vadd.f32 %v581, %v689
      %v691 = vpop.f32.mrb[0].mxu0
      %v692 = vpop.f32.mrb[0].mxu0
      %v693 = vadd.f32 %v581, %v692
      %v694 = vpop.f32.mrb[0].mxu0
      %695 = vmatprep.mubr.bf16.mxu0 0
      %696 = vmatmul.mubr.bf16.gmra.mrb[0].mxu0 %v603
      %v697 = vpop.f32.mrb[0].mxu0
      %v698 = vadd.f32 %v581, %v697
      %v699 = vpop.f32.mrb[0].mxu0
      %v700 = vpop.f32.mrb[0].mxu0
      %v701 = vadd.f32 %v581, %v700
      %v702 = vpop.f32.mrb[0].mxu0
      %703 = vmatprep.mubr.bf16.mxu0 0
      %704 = vmatmul.mubr.bf16.gmra.mrb[0].mxu0 %v606
      %v705 = vpop.f32.mrb[0].mxu0
      %v706 = vadd.f32 %v581, %v705
      %v707 = vpop.f32.mrb[0].mxu0
      %v708 = vpop.f32.mrb[0].mxu0
      %v709 = vadd.f32 %v581, %v708
      %v710 = vpop.f32.mrb[0].mxu0
      %711 = vdwg.mxu0
      %v712 = vmax.f32 %v650, 0.0
      %v713 = vmax.f32 %v653, 0.0
      %v714 = vmax.f32 %v658, 0.0
      %v715 = vmax.f32 %v661, 0.0
      %v716 = vmax.f32 %v666, 0.0
      %v717 = vmax.f32 %v669, 0.0
      %v718 = vmax.f32 %v674, 0.0
      %v719 = vmax.f32 %v677, 0.0
      %v720 = vmax.f32 %v682, 0.0
      %v721 = vmax.f32 %v685, 0.0
      %v722 = vmax.f32 %v690, 0.0
      %v723 = vmax.f32 %v693, 0.0
      %v724 = vmax.f32 %v698, 0.0
      %v725 = vmax.f32 %v701, 0.0
      %v726 = vmax.f32 %v706, 0.0
      %v727 = vmax.f32 %v709, 0.0
      %v728 = vpack.c.bf16 %v713, %v712
      %v729 = vpack.c.bf16 %v715, %v714
      %v730 = vpack.c.bf16 %v717, %v716
      %v731 = vpack.c.bf16 %v719, %v718
      %v732 = vpack.c.bf16 %v721, %v720
      %v733 = vpack.c.bf16 %v723, %v722
      %v734 = vpack.c.bf16 %v725, %v724
      %v735 = vpack.c.bf16 %v727, %v726
      %v736 = vld [vmem:[%s3] sm:$0xf]
      %v737 = vld [vmem:[%s3 + $0x4] sm:$0xf]
      %v738 = vld [vmem:[%s3 + $0x8] sm:$0xf]
      %v739 = vld [vmem:[%s3 + $0xc] sm:$0xf]
      %v740 = vld [vmem:[%s3 + $0x10] sm:$0xf]
      %v741 = vld [vmem:[%s3 + $0x14] sm:$0xf]
      %v742 = vld [vmem:[%s3 + $0x18] sm:$0xf]
      %v743 = vld [vmem:[%s3 + $0x1c] sm:$0xf]
      %v744 = vld [vmem:[%s4] sm:$0x1]
      %v746 = vlaneseq
      %v747 = vshrl.u32 %v746, 7
      %v748 = vsub.s32 0, %v747
      %v749 = vrot.slane %v744, %v748
      %v759 = vunpack.c.l.b16 %v736
      %v760 = vunpack.c.l.b16 %v737
      %v761 = vunpack.c.l.b16 %v738
      %v762 = vunpack.c.l.b16 %v739
      %v763 = vunpack.c.l.b16 %v740
      %v764 = vunpack.c.l.b16 %v741
      %v765 = vunpack.c.l.b16 %v742
      %v766 = vunpack.c.l.b16 %v743
      %v767 = vpack.c.b16 %v760, %v759
      %v768 = vpack.c.b16 %v762, %v761
      %v769 = vpack.c.b16 %v764, %v763
      %v770 = vpack.c.b16 %v766, %v765
      %vm775 = vcmask 523264
      %v777 = vsel %vm775, %v728, 0
      %v780 = vsel %vm775, %v729, 0
      %v783 = vsel %vm775, %v730, 0
      %v786 = vsel %vm775, %v731, 0
      %v789 = vsel %vm775, %v732, 0
      %v792 = vsel %vm775, %v733, 0
      %v795 = vsel %vm775, %v734, 0
      %v798 = vsel %vm775, %v735, 0
      %800 = vmatprep.subr.bf16.mxu0 0
      %801 = vmatpush1.bf16.msra.mxu0 %v767
      %802 = vmatprep.subr.bf16.mxu0 0
      %803 = vmatpush1.bf16.msra.mxu0 %v768
      %804 = vmatprep.subr.bf16.mxu0 0
      %805 = vmatpush1.bf16.msra.mxu0 %v769
      %806 = vmatprep.subr.bf16.mxu0 0
      %807 = vmatpush1.bf16.msra.mxu0 %v770
      %808 = vmatprep.subr.bf16.mxu0 0
      %809 = vmatpush1.bf16.msra.mxu0 0
      %810 = vmatprep.subr.bf16.mxu0 0
      %811 = vmatpush1.bf16.msra.mxu0 0
      %812 = vmatprep.subr.bf16.mxu0 0
      %813 = vmatpush1.bf16.msra.mxu0 0
      %814 = vmatprep.subr.bf16.mxu0 0
      %815 = vmatpush1.bf16.msra.mxu0 0
      %816 = vmatprep.subr.bf16.mxu0 0
      %817 = vmatpush1.bf16.msra.mxu0 0
      %818 = vmatprep.subr.bf16.mxu0 0
      %819 = vmatpush1.bf16.msra.mxu0 0
      %820 = vmatprep.subr.bf16.mxu0 0
      %821 = vmatpush1.bf16.msra.mxu0 0
      %822 = vmatprep.subr.bf16.mxu0 0
      %823 = vmatpush1.bf16.msra.mxu0 0
      %824 = vmatprep.subr.bf16.mxu0 0
      %825 = vmatpush1.bf16.msra.mxu0 0
      %826 = vmatprep.subr.bf16.mxu0 0
      %827 = vmatpush1.bf16.msra.mxu0 0
      %828 = vmatprep.subr.bf16.mxu0 0
      %829 = vmatpush1.bf16.msra.mxu0 0
      %830 = vmatprep.subr.bf16.mxu0 0
      %831 = vmatpush1.bf16.msra.mxu0 0
      %832 = vmatprep.mubr.bf16.mxu0 0
      %833 = vmatmul.mubr.bf16.gmra.mrb[0].mxu0 %v777
      %v834 = vpop.f32.mrb[0].mxu0
      %v835 = vadd.f32 %v749, %v834
      %v836 = vpop.f32.mrb[0].mxu0
      %v837 = vpop.f32.mrb[0].mxu0
      %v838 = vadd.f32 %v749, %v837
      %v839 = vpop.f32.mrb[0].mxu0
      %840 = vmatprep.mubr.bf16.mxu0 0
      %841 = vmatmul.mubr.bf16.gmra.mrb[0].mxu0 %v780
      %v842 = vpop.f32.mrb[0].mxu0
      %v843 = vadd.f32 %v749, %v842
      %v844 = vpop.f32.mrb[0].mxu0
      %v845 = vpop.f32.mrb[0].mxu0
      %v846 = vadd.f32 %v749, %v845
      %v847 = vpop.f32.mrb[0].mxu0
      %848 = vmatprep.mubr.bf16.mxu0 0
      %849 = vmatmul.mubr.bf16.gmra.mrb[0].mxu0 %v783
      %v850 = vpop.f32.mrb[0].mxu0
      %v851 = vadd.f32 %v749, %v850
      %v852 = vpop.f32.mrb[0].mxu0
      %v853 = vpop.f32.mrb[0].mxu0
      %v854 = vadd.f32 %v749, %v853
      %v855 = vpop.f32.mrb[0].mxu0
      %856 = vmatprep.mubr.bf16.mxu0 0
      %857 = vmatmul.mubr.bf16.gmra.mrb[0].mxu0 %v786
      %v858 = vpop.f32.mrb[0].mxu0
      %v859 = vadd.f32 %v749, %v858
      %v860 = vpop.f32.mrb[0].mxu0
      %v861 = vpop.f32.mrb[0].mxu0
      %v862 = vadd.f32 %v749, %v861
      %v863 = vpop.f32.mrb[0].mxu0
      %864 = vmatprep.mubr.bf16.mxu0 0
      %865 = vmatmul.mubr.bf16.gmra.mrb[0].mxu0 %v789
      %v866 = vpop.f32.mrb[0].mxu0
      %v867 = vadd.f32 %v749, %v866
      %v868 = vpop.f32.mrb[0].mxu0
      %v869 = vpop.f32.mrb[0].mxu0
      %v870 = vadd.f32 %v749, %v869
      %v871 = vpop.f32.mrb[0].mxu0
      %872 = vmatprep.mubr.bf16.mxu0 0
      %873 = vmatmul.mubr.bf16.gmra.mrb[0].mxu0 %v792
      %v874 = vpop.f32.mrb[0].mxu0
      %v875 = vadd.f32 %v749, %v874
      %v876 = vpop.f32.mrb[0].mxu0
      %v877 = vpop.f32.mrb[0].mxu0
      %v878 = vadd.f32 %v749, %v877
      %v879 = vpop.f32.mrb[0].mxu0
      %880 = vmatprep.mubr.bf16.mxu0 0
      %881 = vmatmul.mubr.bf16.gmra.mrb[0].mxu0 %v795
      %v882 = vpop.f32.mrb[0].mxu0
      %v883 = vadd.f32 %v749, %v882
      %v884 = vpop.f32.mrb[0].mxu0
      %v885 = vpop.f32.mrb[0].mxu0
      %v886 = vadd.f32 %v749, %v885
      %v887 = vpop.f32.mrb[0].mxu0
      %888 = vmatprep.mubr.bf16.mxu0 0
      %889 = vmatmul.mubr.bf16.gmra.mrb[0].mxu0 %v798
      %v890 = vpop.f32.mrb[0].mxu0
      %v891 = vadd.f32 %v749, %v890
      %v892 = vpop.f32.mrb[0].mxu0
      %v893 = vpop.f32.mrb[0].mxu0
      %v894 = vadd.f32 %v749, %v893
      %v895 = vpop.f32.mrb[0].mxu0
      %896 = vdwg.mxu0
      %v897 = vmax.f32 %v835, 0.0
      %v898 = vmax.f32 %v838, 0.0
      %v899 = vmax.f32 %v843, 0.0
      %v900 = vmax.f32 %v846, 0.0
      %v901 = vmax.f32 %v851, 0.0
      %v902 = vmax.f32 %v854, 0.0
      %v903 = vmax.f32 %v859, 0.0
      %v904 = vmax.f32 %v862, 0.0
      %v905 = vmax.f32 %v867, 0.0
      %v906 = vmax.f32 %v870, 0.0
      %v907 = vmax.f32 %v875, 0.0
      %v908 = vmax.f32 %v878, 0.0
      %v909 = vmax.f32 %v883, 0.0
      %v910 = vmax.f32 %v886, 0.0
      %v911 = vmax.f32 %v891, 0.0
      %v912 = vmax.f32 %v894, 0.0
      %v913 = vpack.c.bf16 %v898, %v897
      %v914 = vpack.c.bf16 %v900, %v899
      %v915 = vpack.c.bf16 %v902, %v901
      %v916 = vpack.c.bf16 %v904, %v903
      %v917 = vpack.c.bf16 %v906, %v905
      %v918 = vpack.c.bf16 %v908, %v907
      %v919 = vpack.c.bf16 %v910, %v909
      %v920 = vpack.c.bf16 %v912, %v911
      %v921 = vld [vmem:[%s5] sm:$0xff]
      %v922 = vld [vmem:[%s5 + $0x8] sm:$0xff]
      %v923 = vld [vmem:[%s5 + $0x10] sm:$0xff]
      %v924 = vld [vmem:[%s5 + $0x18] sm:$0xff]
      %v925 = vld [vmem:[%s5 + $0x20] sm:$0xff]
      %v926 = vld [vmem:[%s5 + $0x28] sm:$0xff]
      %v927 = vld [vmem:[%s5 + $0x30] sm:$0xff]
      %v928 = vld [vmem:[%s5 + $0x38] sm:$0xff]
      %v929 = vld [vmem:[%s5 + $0x40] sm:$0xff]
      %v930 = vld [vmem:[%s5 + $0x48] sm:$0xff]
      %v931 = vld [vmem:[%s5 + $0x50] sm:$0xff]
      %v932 = vld [vmem:[%s5 + $0x58] sm:$0xff]
      %v933 = vld [vmem:[%s5 + $0x60] sm:$0xff]
      %v934 = vld [vmem:[%s5 + $0x68] sm:$0xff]
      %v935 = vld [vmem:[%s5 + $0x70] sm:$0xff]
      %v936 = vld [vmem:[%s5 + $0x78] sm:$0xff]
      %v937 = vld [vmem:[%s6] sm:$0x3]
      %v939 = vlaneseq
      %v940 = vshrl.u32 %v939, 7
      %v941 = vsub.s32 0, %v940
      %v942 = vrot.slane %v937, %v941
      %v943 = vlaneseq
      %v944 = vshrl.u32 %v943, 7
      %v945 = vsub.s32 1, %v944
      %v946 = vrot.slane %v937, %v945
      %v965 = vunpack.c.l.b16 %v921
      %v966 = vunpack.c.h.b16 %v921
      %v967 = vunpack.c.l.b16 %v922
      %v968 = vunpack.c.h.b16 %v922
      %v969 = vunpack.c.l.b16 %v923
      %v970 = vunpack.c.h.b16 %v923
      %v971 = vunpack.c.l.b16 %v924
      %v972 = vunpack.c.h.b16 %v924
      %v973 = vunpack.c.l.b16 %v925
      %v974 = vunpack.c.h.b16 %v925
      %v975 = vunpack.c.l.b16 %v926
      %v976 = vunpack.c.h.b16 %v926
      %v977 = vunpack.c.l.b16 %v927
      %v978 = vunpack.c.h.b16 %v927
      %v979 = vunpack.c.l.b16 %v928
      %v980 = vunpack.c.h.b16 %v928
      %v981 = vunpack.c.l.b16 %v929
      %v982 = vunpack.c.h.b16 %v929
      %v983 = vunpack.c.l.b16 %v930
      %v984 = vunpack.c.h.b16 %v930
      %v985 = vunpack.c.l.b16 %v931
      %v986 = vunpack.c.h.b16 %v931
      %v987 = vunpack.c.l.b16 %v932
      %v988 = vunpack.c.h.b16 %v932
      %v989 = vunpack.c.l.b16 %v933
      %v990 = vunpack.c.h.b16 %v933
      %v991 = vunpack.c.l.b16 %v934
      %v992 = vunpack.c.h.b16 %v934
      %v993 = vunpack.c.l.b16 %v935
      %v994 = vunpack.c.h.b16 %v935
      %v995 = vunpack.c.l.b16 %v936
      %v996 = vunpack.c.h.b16 %v936
      %v997 = vpack.c.b16 %v967, %v965
      %v998 = vpack.c.b16 %v968, %v966
      %v999 = vpack.c.b16 %v971, %v969
      %v1000 = vpack.c.b16 %v972, %v970
      %v1001 = vpack.c.b16 %v975, %v973
      %v1002 = vpack.c.b16 %v976, %v974
      %v1003 = vpack.c.b16 %v979, %v977
      %v1004 = vpack.c.b16 %v980, %v978
      %v1005 = vpack.c.b16 %v983, %v981
      %v1006 = vpack.c.b16 %v984, %v982
      %v1007 = vpack.c.b16 %v987, %v985
      %v1008 = vpack.c.b16 %v988, %v986
      %v1009 = vpack.c.b16 %v991, %v989
      %v1010 = vpack.c.b16 %v992, %v990
      %v1011 = vpack.c.b16 %v995, %v993
      %v1012 = vpack.c.b16 %v996, %v994
      %1029 = vmatprep.subr.bf16.mxu0 %v998
      %1030 = vmatpush1.bf16.msra.mxu0 %v997
      %1031 = vmatprep.subr.bf16.mxu0 %v1000
      %1032 = vmatpush1.bf16.msra.mxu0 %v999
      %1033 = vmatprep.subr.bf16.mxu0 %v1002
      %1034 = vmatpush1.bf16.msra.mxu0 %v1001
      %1035 = vmatprep.subr.bf16.mxu0 %v1004
      %1036 = vmatpush1.bf16.msra.mxu0 %v1003
      %1037 = vmatprep.subr.bf16.mxu0 %v1006
      %1038 = vmatpush1.bf16.msra.mxu0 %v1005
      %1039 = vmatprep.subr.bf16.mxu0 %v1008
      %1040 = vmatpush1.bf16.msra.mxu0 %v1007
      %1041 = vmatprep.subr.bf16.mxu0 %v1010
      %1042 = vmatpush1.bf16.msra.mxu0 %v1009
      %1043 = vmatprep.subr.bf16.mxu0 %v1012
      %1044 = vmatpush1.bf16.msra.mxu0 %v1011
      %1045 = vmatprep.subr.bf16.mxu0 0
      %1046 = vmatpush1.bf16.msra.mxu0 0
      %1047 = vmatprep.subr.bf16.mxu0 0
      %1048 = vmatpush1.bf16.msra.mxu0 0
      %1049 = vmatprep.subr.bf16.mxu0 0
      %1050 = vmatpush1.bf16.msra.mxu0 0
      %1051 = vmatprep.subr.bf16.mxu0 0
      %1052 = vmatpush1.bf16.msra.mxu0 0
      %1053 = vmatprep.subr.bf16.mxu0 0
      %1054 = vmatpush1.bf16.msra.mxu0 0
      %1055 = vmatprep.subr.bf16.mxu0 0
      %1056 = vmatpush1.bf16.msra.mxu0 0
      %1057 = vmatprep.subr.bf16.mxu0 0
      %1058 = vmatpush1.bf16.msra.mxu0 0
      %1059 = vmatprep.subr.bf16.mxu0 0
      %1060 = vmatpush1.bf16.msra.mxu0 0
      %1061 = vmatprep.mubr.bf16.mxu0 0
      %1062 = vmatmul.mubr.bf16.gmra.mrb[0].mxu0 %v913
      %v1063 = vpop.f32.mrb[0].mxu0
      %v1064 = vadd.f32 %v942, %v1063
      %v1065 = vpop.f32.mrb[0].mxu0
      %v1066 = vadd.f32 %v946, %v1065
      %v1067 = vpop.f32.mrb[0].mxu0
      %v1068 = vadd.f32 %v942, %v1067
      %v1069 = vpop.f32.mrb[0].mxu0
      %v1070 = vadd.f32 %v946, %v1069
      %1071 = vmatprep.mubr.bf16.mxu0 0
      %1072 = vmatmul.mubr.bf16.gmra.mrb[0].mxu0 %v914
      %v1073 = vpop.f32.mrb[0].mxu0
      %v1074 = vadd.f32 %v942, %v1073
      %v1075 = vpop.f32.mrb[0].mxu0
      %v1076 = vadd.f32 %v946, %v1075
      %v1077 = vpop.f32.mrb[0].mxu0
      %v1078 = vadd.f32 %v942, %v1077
      %v1079 = vpop.f32.mrb[0].mxu0
      %v1080 = vadd.f32 %v946, %v1079
      %1081 = vmatprep.mubr.bf16.mxu0 0
      %1082 = vmatmul.mubr.bf16.gmra.mrb[0].mxu0 %v915
      %v1083 = vpop.f32.mrb[0].mxu0
      %v1084 = vadd.f32 %v942, %v1083
      %v1085 = vpop.f32.mrb[0].mxu0
      %v1086 = vadd.f32 %v946, %v1085
      %v1087 = vpop.f32.mrb[0].mxu0
      %v1088 = vadd.f32 %v942, %v1087
      %v1089 = vpop.f32.mrb[0].mxu0
      %v1090 = vadd.f32 %v946, %v1089
      %1091 = vmatprep.mubr.bf16.mxu0 0
      %1092 = vmatmul.mubr.bf16.gmra.mrb[0].mxu0 %v916
      %v1093 = vpop.f32.mrb[0].mxu0
      %v1094 = vadd.f32 %v942, %v1093
      %v1095 = vpop.f32.mrb[0].mxu0
      %v1096 = vadd.f32 %v946, %v1095
      %v1097 = vpop.f32.mrb[0].mxu0
      %v1098 = vadd.f32 %v942, %v1097
      %v1099 = vpop.f32.mrb[0].mxu0
      %v1100 = vadd.f32 %v946, %v1099
      %1101 = vmatprep.mubr.bf16.mxu0 0
      %1102 = vmatmul.mubr.bf16.gmra.mrb[0].mxu0 %v917
      %v1103 = vpop.f32.mrb[0].mxu0
      %v1104 = vadd.f32 %v942, %v1103
      %v1105 = vpop.f32.mrb[0].mxu0
      %v1106 = vadd.f32 %v946, %v1105
      %v1107 = vpop.f32.mrb[0].mxu0
      %v1108 = vadd.f32 %v942, %v1107
      %v1109 = vpop.f32.mrb[0].mxu0
      %v1110 = vadd.f32 %v946, %v1109
      %1111 = vmatprep.mubr.bf16.mxu0 0
      %1112 = vmatmul.mubr.bf16.gmra.mrb[0].mxu0 %v918
      %v1113 = vpop.f32.mrb[0].mxu0
      %v1114 = vadd.f32 %v942, %v1113
      %v1115 = vpop.f32.mrb[0].mxu0
      %v1116 = vadd.f32 %v946, %v1115
      %v1117 = vpop.f32.mrb[0].mxu0
      %v1118 = vadd.f32 %v942, %v1117
      %v1119 = vpop.f32.mrb[0].mxu0
      %v1120 = vadd.f32 %v946, %v1119
      %1121 = vmatprep.mubr.bf16.mxu0 0
      %1122 = vmatmul.mubr.bf16.gmra.mrb[0].mxu0 %v919
      %v1123 = vpop.f32.mrb[0].mxu0
      %v1124 = vadd.f32 %v942, %v1123
      %v1125 = vpop.f32.mrb[0].mxu0
      %v1126 = vadd.f32 %v946, %v1125
      %v1127 = vpop.f32.mrb[0].mxu0
      %v1128 = vadd.f32 %v942, %v1127
      %v1129 = vpop.f32.mrb[0].mxu0
      %v1130 = vadd.f32 %v946, %v1129
      %1131 = vmatprep.mubr.bf16.mxu0 0
      %1132 = vmatmul.mubr.bf16.gmra.mrb[0].mxu0 %v920
      %v1133 = vpop.f32.mrb[0].mxu0
      %v1134 = vadd.f32 %v942, %v1133
      %v1135 = vpop.f32.mrb[0].mxu0
      %v1136 = vadd.f32 %v946, %v1135
      %v1137 = vpop.f32.mrb[0].mxu0
      %v1138 = vadd.f32 %v942, %v1137
      %v1139 = vpop.f32.mrb[0].mxu0
      %v1140 = vadd.f32 %v946, %v1139
      %1141 = vdwg.mxu0
      %v1142 = vmax.f32 %v1064, 0.0
      %v1143 = vmax.f32 %v1066, 0.0
      %v1144 = vmax.f32 %v1068, 0.0
      %v1145 = vmax.f32 %v1070, 0.0
      %v1146 = vmax.f32 %v1074, 0.0
      %v1147 = vmax.f32 %v1076, 0.0
      %v1148 = vmax.f32 %v1078, 0.0
      %v1149 = vmax.f32 %v1080, 0.0
      %v1150 = vmax.f32 %v1084, 0.0
      %v1151 = vmax.f32 %v1086, 0.0
      %v1152 = vmax.f32 %v1088, 0.0
      %v1153 = vmax.f32 %v1090, 0.0
      %v1154 = vmax.f32 %v1094, 0.0
      %v1155 = vmax.f32 %v1096, 0.0
      %v1156 = vmax.f32 %v1098, 0.0
      %v1157 = vmax.f32 %v1100, 0.0
      %v1158 = vmax.f32 %v1104, 0.0
      %v1159 = vmax.f32 %v1106, 0.0
      %v1160 = vmax.f32 %v1108, 0.0
      %v1161 = vmax.f32 %v1110, 0.0
      %v1162 = vmax.f32 %v1114, 0.0
      %v1163 = vmax.f32 %v1116, 0.0
      %v1164 = vmax.f32 %v1118, 0.0
      %v1165 = vmax.f32 %v1120, 0.0
      %v1166 = vmax.f32 %v1124, 0.0
      %v1167 = vmax.f32 %v1126, 0.0
      %v1168 = vmax.f32 %v1128, 0.0
      %v1169 = vmax.f32 %v1130, 0.0
      %v1170 = vmax.f32 %v1134, 0.0
      %v1171 = vmax.f32 %v1136, 0.0
      %v1172 = vmax.f32 %v1138, 0.0
      %v1173 = vmax.f32 %v1140, 0.0
      %v1174 = vpack.c.bf16 %v1144, %v1142
      %v1175 = vpack.c.bf16 %v1145, %v1143
      %v1176 = vpack.c.bf16 %v1148, %v1146
      %v1177 = vpack.c.bf16 %v1149, %v1147
      %v1178 = vpack.c.bf16 %v1152, %v1150
      %v1179 = vpack.c.bf16 %v1153, %v1151
      %v1180 = vpack.c.bf16 %v1156, %v1154
      %v1181 = vpack.c.bf16 %v1157, %v1155
      %v1182 = vpack.c.bf16 %v1160, %v1158
      %v1183 = vpack.c.bf16 %v1161, %v1159
      %v1184 = vpack.c.bf16 %v1164, %v1162
      %v1185 = vpack.c.bf16 %v1165, %v1163
      %v1186 = vpack.c.bf16 %v1168, %v1166
      %v1187 = vpack.c.bf16 %v1169, %v1167
      %v1188 = vpack.c.bf16 %v1172, %v1170
      %v1189 = vpack.c.bf16 %v1173, %v1171
      %s1190 = smul.u32 %s32, 16
      %s1191 = smul.addr %s1190, 8
      %s1192 = scalar_lea.vmem [#allocation2], %s1191
      %1193 = vst [vmem:[%s1192] sm:$0xff] %v1174
      %1194 = vst [vmem:[%s1192 + $0x8] sm:$0xff] %v1175
      %1195 = vst [vmem:[%s1192 + $0x10] sm:$0xff] %v1176
      %1196 = vst [vmem:[%s1192 + $0x18] sm:$0xff] %v1177
      %1197 = vst [vmem:[%s1192 + $0x20] sm:$0xff] %v1178
      %1198 = vst [vmem:[%s1192 + $0x28] sm:$0xff] %v1179
      %1199 = vst [vmem:[%s1192 + $0x30] sm:$0xff] %v1180
      %1200 = vst [vmem:[%s1192 + $0x38] sm:$0xff] %v1181
      %1201 = vst [vmem:[%s1192 + $0x40] sm:$0xff] %v1182
      %1202 = vst [vmem:[%s1192 + $0x48] sm:$0xff] %v1183
      %1203 = vst [vmem:[%s1192 + $0x50] sm:$0xff] %v1184
      %1204 = vst [vmem:[%s1192 + $0x58] sm:$0xff] %v1185
      %1205 = vst [vmem:[%s1192 + $0x60] sm:$0xff] %v1186
      %1206 = vst [vmem:[%s1192 + $0x68] sm:$0xff] %v1187
      %1207 = vst [vmem:[%s1192 + $0x70] sm:$0xff] %v1188
      %1208 = vst [vmem:[%s1192 + $0x78] sm:$0xff] %v1189
      %v1209 = vmax.bf16 %v1174, %v1178
      %v1210 = vmax.bf16 %v1176, %v1180
      %v1211 = vmax.bf16 %v1209, %v1182
      %v1212 = vmax.bf16 %v1210, %v1184
      %v1213 = vmax.bf16 %v1211, %v1186
      %v1214 = vmax.bf16 %v1212, %v1188
      %v1215 = vmax.bf16 %v1213, %v1214
      %v1216 = vunpack.i.l.bf16 %v1215
      %v1217 = vunpack.i.h.bf16 %v1215
      %v1218 = vmax.f32 %v1216, %v1217
      %v1219 = vrot.slane %v1218, 4
      %v1220 = vmax.f32 %v1218, %v1219
      %v1221 = vrot.slane %v1220, 2
      %v1222 = vmax.f32 %v1220, %v1221
      %v1223 = vrot.slane %v1222, 1
      %v1224 = vmax.f32 %v1222, %v1223
      %v1225 = vpack.i.bf16 %v1224, %v1224
      %v1226 = vmax.bf16 %v1175, %v1179
      %v1227 = vmax.bf16 %v1177, %v1181
      %v1228 = vmax.bf16 %v1226, %v1183
      %v1229 = vmax.bf16 %v1227, %v1185
      %v1230 = vmax.bf16 %v1228, %v1187
      %v1231 = vmax.bf16 %v1229, %v1189
      %v1232 = vmax.bf16 %v1230, %v1231
      %v1233 = vunpack.i.l.bf16 %v1232
      %v1234 = vunpack.i.h.bf16 %v1232
      %v1235 = vmax.f32 %v1233, %v1234
      %v1236 = vrot.slane %v1235, 4
      %v1237 = vmax.f32 %v1235, %v1236
      %v1238 = vrot.slane %v1237, 2
      %v1239 = vmax.f32 %v1237, %v1238
      %v1240 = vrot.slane %v1239, 1
      %v1241 = vmax.f32 %v1239, %v1240
      %v1242 = vpack.i.bf16 %v1241, %v1241
      %v1243 = vunpack.c.l.bf16 %v1225
      %v1244 = vunpack.c.l.bf16 %v1242
      %p1245 = scmp.eq.s32.totalorder %s32, 0
      // Predicated region
      $region85: #{pointnet_forward.1} parent=83 // pred_check
        %p1246 = pneg %p1245
      $region86: #{pointnet_forward.1} parent=83 // pred_check_branch
        %1248 = sbr.rel (%p1246) target = $region88
      $region87: #{pointnet_forward.1} parent=83 // pred_region
        %v1251 = vcombine.low %v1243, %v1244
        %v1253 = vunpack.c.l.s4 1966171168
        %v1254 = vunpack.c.0.s8 %v1253
        %v1255 = vlaneseq
        %v1256 = vshrl.u32 %v1255, 7
        %v1257 = vsub.s32 %v1254, %v1256
        %v1258 = vrot.slane %v1251, %v1257
        %v1260 = vunpack.c.l.s4 1966171168
        %v1261 = vunpack.c.0.s8 %v1260
        %v1262 = vlaneseq
        %v1263 = vshrl.u32 %v1262, 7
        %v1264 = vsub.s32 %v1261, %v1263
        %v1265 = vrot.slane %v1258, %v1264
        %v1267 = vlaneseq
        %vm1268 = vcmp.ge.s32.totalorder %v1267, 0
        %vm1269 = vcmp.lt.s32.totalorder %v1267, 256
        %vm1270 = vmand %vm1268, %vm1269
        %1271 = vst.msk [vmem:[#allocation3] sm:$0x3] %vm1270, %v1265
      $region88: #{pointnet_forward.1} parent=83 // pred_fallthru
        _
      %p1272 = scmp.gt.s32.totalorder %s32, 0
      // Predicated region
      $region89: #{pointnet_forward.1} parent=83 // pred_check
        %p1273 = pneg %p1272
      $region90: #{pointnet_forward.1} parent=83 // pred_check_branch
        %1275 = sbr.rel (%p1273) target = $region92
      $region91: #{pointnet_forward.1} parent=83 // pred_region
        %v1276 = vld [vmem:[#allocation3] sm:$0x3]
        %v1279 = vcombine.low %v1243, %v1244
        %v1281 = vunpack.c.l.s4 1966171168
        %v1282 = vunpack.c.0.s8 %v1281
        %v1283 = vlaneseq
        %v1284 = vshrl.u32 %v1283, 7
        %v1285 = vsub.s32 %v1282, %v1284
        %v1286 = vrot.slane %v1279, %v1285
        %v1288 = vunpack.c.l.s4 1966171168
        %v1289 = vunpack.c.0.s8 %v1288
        %v1290 = vlaneseq
        %v1291 = vshrl.u32 %v1290, 7
        %v1292 = vsub.s32 %v1289, %v1291
        %v1293 = vrot.slane %v1286, %v1292
        %v1295 = vmax.f32 %v1276, %v1293
        %v1296 = vlaneseq
        %vm1297 = vcmp.ge.s32.totalorder %v1296, 0
        %vm1298 = vcmp.lt.s32.totalorder %v1296, 256
        %vm1299 = vmand %vm1297, %vm1298
        %1300 = vst.msk [vmem:[#allocation3] sm:$0x3] %vm1299, %v1295
      $region92: #{pointnet_forward.1} parent=83 // pred_fallthru
        _
      %p1301 = scmp.eq.s32.totalorder %s32, 2
      // Predicated region
      $region93: #{pointnet_forward.1} parent=83 // pred_check
        %p1302 = pneg %p1301
      $region94: #{pointnet_forward.1} parent=83 // pred_check_branch
        %1304 = sbr.rel (%p1302) target = $region96
      $region95: #{pointnet_forward.1} parent=83 // pred_region
        %v1305 = vld [vmem:[#allocation3] sm:$0x3]
        %v1307 = vlaneseq
        %v1308 = vshrl.u32 %v1307, 7
        %v1309 = vsub.s32 0, %v1308
        %v1310 = vrot.slane %v1305, %v1309
        %v1311 = vlaneseq
        %v1312 = vshrl.u32 %v1311, 7
        %v1313 = vsub.s32 1, %v1312
        %v1314 = vrot.slane %v1305, %v1313
        %v1317 = vpack.c.bf16 %v1310, %v1310
        %v1318 = vpack.c.bf16 %v1314, %v1314
        %v1319 = vld [vmem:[%s8] sm:$0xff]
        %v1320 = vld [vmem:[%s8 + $0x8] sm:$0xff]
        %v1321 = vld [vmem:[%s8 + $0x10] sm:$0xff]
        %v1322 = vld [vmem:[%s8 + $0x18] sm:$0xff]
        %v1323 = vld [vmem:[%s8 + $0x20] sm:$0xff]
        %v1324 = vld [vmem:[%s8 + $0x28] sm:$0xff]
        %v1325 = vld [vmem:[%s8 + $0x30] sm:$0xff]
        %v1326 = vld [vmem:[%s8 + $0x38] sm:$0xff]
        %v1327 = vld [vmem:[%s8 + $0x40] sm:$0xff]
        %v1328 = vld [vmem:[%s8 + $0x48] sm:$0xff]
        %v1329 = vld [vmem:[%s8 + $0x50] sm:$0xff]
        %v1330 = vld [vmem:[%s8 + $0x58] sm:$0xff]
        %v1331 = vld [vmem:[%s8 + $0x60] sm:$0xff]
        %v1332 = vld [vmem:[%s8 + $0x68] sm:$0xff]
        %v1333 = vld [vmem:[%s8 + $0x70] sm:$0xff]
        %v1334 = vld [vmem:[%s8 + $0x78] sm:$0xff]
        %v1335 = vld [vmem:[%s8 + $0x80] sm:$0xff]
        %v1336 = vld [vmem:[%s8 + $0x88] sm:$0xff]
        %v1337 = vld [vmem:[%s8 + $0x90] sm:$0xff]
        %v1338 = vld [vmem:[%s8 + $0x98] sm:$0xff]
        %v1339 = vld [vmem:[%s8 + $0xa0] sm:$0xff]
        %v1340 = vld [vmem:[%s8 + $0xa8] sm:$0xff]
        %v1341 = vld [vmem:[%s8 + $0xb0] sm:$0xff]
        %v1342 = vld [vmem:[%s8 + $0xb8] sm:$0xff]
        %v1343 = vld [vmem:[%s8 + $0xc0] sm:$0xff]
        %v1344 = vld [vmem:[%s8 + $0xc8] sm:$0xff]
        %v1345 = vld [vmem:[%s8 + $0xd0] sm:$0xff]
        %v1346 = vld [vmem:[%s8 + $0xd8] sm:$0xff]
        %v1347 = vld [vmem:[%s8 + $0xe0] sm:$0xff]
        %v1348 = vld [vmem:[%s8 + $0xe8] sm:$0xff]
        %v1349 = vld [vmem:[%s8 + $0xf0] sm:$0xff]
        %v1350 = vld [vmem:[%s8 + $0xf8] sm:$0xff]
        %v1351 = vld [vmem:[%s9] sm:$0x3]
        %v1384 = vunpack.c.l.b16 %v1319
        %v1385 = vunpack.c.h.b16 %v1319
        %v1386 = vunpack.c.l.b16 %v1320
        %v1387 = vunpack.c.h.b16 %v1320
        %v1388 = vunpack.c.l.b16 %v1321
        %v1389 = vunpack.c.h.b16 %v1321
        %v1390 = vunpack.c.l.b16 %v1322
        %v1391 = vunpack.c.h.b16 %v1322
        %v1392 = vunpack.c.l.b16 %v1323
        %v1393 = vunpack.c.h.b16 %v1323
        %v1394 = vunpack.c.l.b16 %v1324
        %v1395 = vunpack.c.h.b16 %v1324
        %v1396 = vunpack.c.l.b16 %v1325
        %v1397 = vunpack.c.h.b16 %v1325
        %v1398 = vunpack.c.l.b16 %v1326
        %v1399 = vunpack.c.h.b16 %v1326
        %v1400 = vunpack.c.l.b16 %v1327
        %v1401 = vunpack.c.h.b16 %v1327
        %v1402 = vunpack.c.l.b16 %v1328
        %v1403 = vunpack.c.h.b16 %v1328
        %v1404 = vunpack.c.l.b16 %v1329
        %v1405 = vunpack.c.h.b16 %v1329
        %v1406 = vunpack.c.l.b16 %v1330
        %v1407 = vunpack.c.h.b16 %v1330
        %v1408 = vunpack.c.l.b16 %v1331
        %v1409 = vunpack.c.h.b16 %v1331
        %v1410 = vunpack.c.l.b16 %v1332
        %v1411 = vunpack.c.h.b16 %v1332
        %v1412 = vunpack.c.l.b16 %v1333
        %v1413 = vunpack.c.h.b16 %v1333
        %v1414 = vunpack.c.l.b16 %v1334
        %v1415 = vunpack.c.h.b16 %v1334
        %v1416 = vunpack.c.l.b16 %v1335
        %v1417 = vunpack.c.h.b16 %v1335
        %v1418 = vunpack.c.l.b16 %v1336
        %v1419 = vunpack.c.h.b16 %v1336
        %v1420 = vunpack.c.l.b16 %v1337
        %v1421 = vunpack.c.h.b16 %v1337
        %v1422 = vunpack.c.l.b16 %v1338
        %v1423 = vunpack.c.h.b16 %v1338
        %v1424 = vunpack.c.l.b16 %v1339
        %v1425 = vunpack.c.h.b16 %v1339
        %v1426 = vunpack.c.l.b16 %v1340
        %v1427 = vunpack.c.h.b16 %v1340
        %v1428 = vunpack.c.l.b16 %v1341
        %v1429 = vunpack.c.h.b16 %v1341
        %v1430 = vunpack.c.l.b16 %v1342
        %v1431 = vunpack.c.h.b16 %v1342
        %v1432 = vunpack.c.l.b16 %v1343
        %v1433 = vunpack.c.h.b16 %v1343
        %v1434 = vunpack.c.l.b16 %v1344
        %v1435 = vunpack.c.h.b16 %v1344
        %v1436 = vunpack.c.l.b16 %v1345
        %v1437 = vunpack.c.h.b16 %v1345
        %v1438 = vunpack.c.l.b16 %v1346
        %v1439 = vunpack.c.h.b16 %v1346
        %v1440 = vunpack.c.l.b16 %v1347
        %v1441 = vunpack.c.h.b16 %v1347
        %v1442 = vunpack.c.l.b16 %v1348
        %v1443 = vunpack.c.h.b16 %v1348
        %v1444 = vunpack.c.l.b16 %v1349
        %v1445 = vunpack.c.h.b16 %v1349
        %v1446 = vunpack.c.l.b16 %v1350
        %v1447 = vunpack.c.h.b16 %v1350
        %v1448 = vpack.c.b16 %v1386, %v1384
        %v1449 = vpack.c.b16 %v1387, %v1385
        %v1450 = vpack.c.b16 %v1390, %v1388
        %v1451 = vpack.c.b16 %v1391, %v1389
        %v1452 = vpack.c.b16 %v1394, %v1392
        %v1453 = vpack.c.b16 %v1395, %v1393
        %v1454 = vpack.c.b16 %v1398, %v1396
        %v1455 = vpack.c.b16 %v1399, %v1397
        %v1456 = vpack.c.b16 %v1402, %v1400
        %v1457 = vpack.c.b16 %v1403, %v1401
        %v1458 = vpack.c.b16 %v1406, %v1404
        %v1459 = vpack.c.b16 %v1407, %v1405
        %v1460 = vpack.c.b16 %v1410, %v1408
        %v1461 = vpack.c.b16 %v1411, %v1409
        %v1462 = vpack.c.b16 %v1414, %v1412
        %v1463 = vpack.c.b16 %v1415, %v1413
        %v1464 = vpack.c.b16 %v1418, %v1416
        %v1465 = vpack.c.b16 %v1419, %v1417
        %v1466 = vpack.c.b16 %v1422, %v1420
        %v1467 = vpack.c.b16 %v1423, %v1421
        %v1468 = vpack.c.b16 %v1426, %v1424
        %v1469 = vpack.c.b16 %v1427, %v1425
        %v1470 = vpack.c.b16 %v1430, %v1428
        %v1471 = vpack.c.b16 %v1431, %v1429
        %v1472 = vpack.c.b16 %v1434, %v1432
        %v1473 = vpack.c.b16 %v1435, %v1433
        %v1474 = vpack.c.b16 %v1438, %v1436
        %v1475 = vpack.c.b16 %v1439, %v1437
        %v1476 = vpack.c.b16 %v1442, %v1440
        %v1477 = vpack.c.b16 %v1443, %v1441
        %v1478 = vpack.c.b16 %v1446, %v1444
        %v1479 = vpack.c.b16 %v1447, %v1445
        %v1513 = vlaneseq
        %v1514 = vshrl.u32 %v1513, 7
        %v1515 = vsub.s32 0, %v1514
        %v1516 = vrot.slane %v1351, %v1515
        %v1517 = vlaneseq
        %v1518 = vshrl.u32 %v1517, 7
        %v1519 = vsub.s32 1, %v1518
        %v1520 = vrot.slane %v1351, %v1519
        %1523 = vmatprep.subr.bf16.mxu0 %v1449
        %1524 = vmatpush1.bf16.msra.mxu0 %v1448
        %1525 = vmatprep.subr.bf16.mxu0 %v1451
        %1526 = vmatpush1.bf16.msra.mxu0 %v1450
        %1527 = vmatprep.subr.bf16.mxu0 %v1453
        %1528 = vmatpush1.bf16.msra.mxu0 %v1452
        %1529 = vmatprep.subr.bf16.mxu0 %v1455
        %1530 = vmatpush1.bf16.msra.mxu0 %v1454
        %1531 = vmatprep.subr.bf16.mxu0 %v1457
        %1532 = vmatpush1.bf16.msra.mxu0 %v1456
        %1533 = vmatprep.subr.bf16.mxu0 %v1459
        %1534 = vmatpush1.bf16.msra.mxu0 %v1458
        %1535 = vmatprep.subr.bf16.mxu0 %v1461
        %1536 = vmatpush1.bf16.msra.mxu0 %v1460
        %1537 = vmatprep.subr.bf16.mxu0 %v1463
        %1538 = vmatpush1.bf16.msra.mxu0 %v1462
        %1539 = vmatprep.subr.bf16.mxu0 %v1465
        %1540 = vmatpush1.bf16.msra.mxu0 %v1464
        %1541 = vmatprep.subr.bf16.mxu0 %v1467
        %1542 = vmatpush1.bf16.msra.mxu0 %v1466
        %1543 = vmatprep.subr.bf16.mxu0 %v1469
        %1544 = vmatpush1.bf16.msra.mxu0 %v1468
        %1545 = vmatprep.subr.bf16.mxu0 %v1471
        %1546 = vmatpush1.bf16.msra.mxu0 %v1470
        %1547 = vmatprep.subr.bf16.mxu0 %v1473
        %1548 = vmatpush1.bf16.msra.mxu0 %v1472
        %1549 = vmatprep.subr.bf16.mxu0 %v1475
        %1550 = vmatpush1.bf16.msra.mxu0 %v1474
        %1551 = vmatprep.subr.bf16.mxu0 %v1477
        %1552 = vmatpush1.bf16.msra.mxu0 %v1476
        %1553 = vmatprep.subr.bf16.mxu0 %v1479
        %1554 = vmatpush1.bf16.msra.mxu0 %v1478
        %1555 = vmatprep.mubr.bf16.mxu0 %v1318
        %1556 = vmatmul.mubr.bf16.gmra.mrb[0].mxu0 %v1317
        %v1557 = vpop.f32.mrb[0].mxu0
        %v1558 = vadd.f32 %v1516, %v1557
        %v1559 = vpop.f32.mrb[0].mxu0
        %v1560 = vadd.f32 %v1520, %v1559
        %v1561 = vpop.f32.mrb[0].mxu0
        %v1562 = vpop.f32.mrb[0].mxu0
        %1563 = vdwg.mxu0
        loop: start=0, step=1, limit=3
        $region97: #{pointnet_forward.1} parent=95 // loop_pre_header
          _
        $region98: #{pointnet_forward.1} parent=95 // loop_header
          %s1565 = sphi 0, %s1569
          %p1566 = scmp.ge.s32.totalorder %s1565, 3
        $region99: #{pointnet_forward.1} parent=95 // loop_header_branch
          %1568 = sbr.rel (%p1566) target = $region103
        $region100: #{pointnet_forward.1} parent=95 // loop_body
          %s1570 = smul.u32 %s1565, 16
          %s1571 = smul.addr %s1570, 8
          %s1572 = scalar_lea.vmem [#allocation2], %s1571
          %v1573 = vld [vmem:[%s1572] sm:$0xff]
          %v1574 = vld [vmem:[%s1572 + $0x8] sm:$0xff]
          %v1575 = vld [vmem:[%s1572 + $0x10] sm:$0xff]
          %v1576 = vld [vmem:[%s1572 + $0x18] sm:$0xff]
          %v1577 = vld [vmem:[%s1572 + $0x20] sm:$0xff]
          %v1578 = vld [vmem:[%s1572 + $0x28] sm:$0xff]
          %v1579 = vld [vmem:[%s1572 + $0x30] sm:$0xff]
          %v1580 = vld [vmem:[%s1572 + $0x38] sm:$0xff]
          %v1581 = vld [vmem:[%s1572 + $0x40] sm:$0xff]
          %v1582 = vld [vmem:[%s1572 + $0x48] sm:$0xff]
          %v1583 = vld [vmem:[%s1572 + $0x50] sm:$0xff]
          %v1584 = vld [vmem:[%s1572 + $0x58] sm:$0xff]
          %v1585 = vld [vmem:[%s1572 + $0x60] sm:$0xff]
          %v1586 = vld [vmem:[%s1572 + $0x68] sm:$0xff]
          %v1587 = vld [vmem:[%s1572 + $0x70] sm:$0xff]
          %v1588 = vld [vmem:[%s1572 + $0x78] sm:$0xff]
          %v1589 = vld [vmem:[%s7] sm:$0xff]
          %v1590 = vld [vmem:[%s7 + $0x8] sm:$0xff]
          %v1591 = vld [vmem:[%s7 + $0x10] sm:$0xff]
          %v1592 = vld [vmem:[%s7 + $0x18] sm:$0xff]
          %v1593 = vld [vmem:[%s7 + $0x20] sm:$0xff]
          %v1594 = vld [vmem:[%s7 + $0x28] sm:$0xff]
          %v1595 = vld [vmem:[%s7 + $0x30] sm:$0xff]
          %v1596 = vld [vmem:[%s7 + $0x38] sm:$0xff]
          %v1597 = vld [vmem:[%s7 + $0x40] sm:$0xff]
          %v1598 = vld [vmem:[%s7 + $0x48] sm:$0xff]
          %v1599 = vld [vmem:[%s7 + $0x50] sm:$0xff]
          %v1600 = vld [vmem:[%s7 + $0x58] sm:$0xff]
          %v1601 = vld [vmem:[%s7 + $0x60] sm:$0xff]
          %v1602 = vld [vmem:[%s7 + $0x68] sm:$0xff]
          %v1603 = vld [vmem:[%s7 + $0x70] sm:$0xff]
          %v1604 = vld [vmem:[%s7 + $0x78] sm:$0xff]
          %v1605 = vld [vmem:[%s7 + $0x80] sm:$0xff]
          %v1606 = vld [vmem:[%s7 + $0x88] sm:$0xff]
          %v1607 = vld [vmem:[%s7 + $0x90] sm:$0xff]
          %v1608 = vld [vmem:[%s7 + $0x98] sm:$0xff]
          %v1609 = vld [vmem:[%s7 + $0xa0] sm:$0xff]
          %v1610 = vld [vmem:[%s7 + $0xa8] sm:$0xff]
          %v1611 = vld [vmem:[%s7 + $0xb0] sm:$0xff]
          %v1612 = vld [vmem:[%s7 + $0xb8] sm:$0xff]
          %v1613 = vld [vmem:[%s7 + $0xc0] sm:$0xff]
          %v1614 = vld [vmem:[%s7 + $0xc8] sm:$0xff]
          %v1615 = vld [vmem:[%s7 + $0xd0] sm:$0xff]
          %v1616 = vld [vmem:[%s7 + $0xd8] sm:$0xff]
          %v1617 = vld [vmem:[%s7 + $0xe0] sm:$0xff]
          %v1618 = vld [vmem:[%s7 + $0xe8] sm:$0xff]
          %v1619 = vld [vmem:[%s7 + $0xf0] sm:$0xff]
          %v1620 = vld [vmem:[%s7 + $0xf8] sm:$0xff]
          %v1621 = vlaneseq
          %v1622 = vshrl.u32 %v1621, 7
          %v1623 = vsub.s32 0, %v1622
          %v1624 = vrot.slane %v1558, %v1623
          %v1625 = vlaneseq
          %v1626 = vshrl.u32 %v1625, 7
          %v1627 = vsub.s32 0, %v1626
          %v1628 = vrot.slane %v1560, %v1627
          %v1661 = vunpack.c.l.b16 %v1589
          %v1662 = vunpack.c.h.b16 %v1589
          %v1663 = vunpack.c.l.b16 %v1590
          %v1664 = vunpack.c.h.b16 %v1590
          %v1665 = vunpack.c.l.b16 %v1591
          %v1666 = vunpack.c.h.b16 %v1591
          %v1667 = vunpack.c.l.b16 %v1592
          %v1668 = vunpack.c.h.b16 %v1592
          %v1669 = vunpack.c.l.b16 %v1593
          %v1670 = vunpack.c.h.b16 %v1593
          %v1671 = vunpack.c.l.b16 %v1594
          %v1672 = vunpack.c.h.b16 %v1594
          %v1673 = vunpack.c.l.b16 %v1595
          %v1674 = vunpack.c.h.b16 %v1595
          %v1675 = vunpack.c.l.b16 %v1596
          %v1676 = vunpack.c.h.b16 %v1596
          %v1677 = vunpack.c.l.b16 %v1597
          %v1678 = vunpack.c.h.b16 %v1597
          %v1679 = vunpack.c.l.b16 %v1598
          %v1680 = vunpack.c.h.b16 %v1598
          %v1681 = vunpack.c.l.b16 %v1599
          %v1682 = vunpack.c.h.b16 %v1599
          %v1683 = vunpack.c.l.b16 %v1600
          %v1684 = vunpack.c.h.b16 %v1600
          %v1685 = vunpack.c.l.b16 %v1601
          %v1686 = vunpack.c.h.b16 %v1601
          %v1687 = vunpack.c.l.b16 %v1602
          %v1688 = vunpack.c.h.b16 %v1602
          %v1689 = vunpack.c.l.b16 %v1603
          %v1690 = vunpack.c.h.b16 %v1603
          %v1691 = vunpack.c.l.b16 %v1604
          %v1692 = vunpack.c.h.b16 %v1604
          %v1693 = vunpack.c.l.b16 %v1605
          %v1694 = vunpack.c.h.b16 %v1605
          %v1695 = vunpack.c.l.b16 %v1606
          %v1696 = vunpack.c.h.b16 %v1606
          %v1697 = vunpack.c.l.b16 %v1607
          %v1698 = vunpack.c.h.b16 %v1607
          %v1699 = vunpack.c.l.b16 %v1608
          %v1700 = vunpack.c.h.b16 %v1608
          %v1701 = vunpack.c.l.b16 %v1609
          %v1702 = vunpack.c.h.b16 %v1609
          %v1703 = vunpack.c.l.b16 %v1610
          %v1704 = vunpack.c.h.b16 %v1610
          %v1705 = vunpack.c.l.b16 %v1611
          %v1706 = vunpack.c.h.b16 %v1611
          %v1707 = vunpack.c.l.b16 %v1612
          %v1708 = vunpack.c.h.b16 %v1612
          %v1709 = vunpack.c.l.b16 %v1613
          %v1710 = vunpack.c.h.b16 %v1613
          %v1711 = vunpack.c.l.b16 %v1614
          %v1712 = vunpack.c.h.b16 %v1614
          %v1713 = vunpack.c.l.b16 %v1615
          %v1714 = vunpack.c.h.b16 %v1615
          %v1715 = vunpack.c.l.b16 %v1616
          %v1716 = vunpack.c.h.b16 %v1616
          %v1717 = vunpack.c.l.b16 %v1617
          %v1718 = vunpack.c.h.b16 %v1617
          %v1719 = vunpack.c.l.b16 %v1618
          %v1720 = vunpack.c.h.b16 %v1618
          %v1721 = vunpack.c.l.b16 %v1619
          %v1722 = vunpack.c.h.b16 %v1619
          %v1723 = vunpack.c.l.b16 %v1620
          %v1724 = vunpack.c.h.b16 %v1620
          %v1725 = vpack.c.b16 %v1663, %v1661
          %v1726 = vpack.c.b16 %v1664, %v1662
          %v1727 = vpack.c.b16 %v1667, %v1665
          %v1728 = vpack.c.b16 %v1668, %v1666
          %v1729 = vpack.c.b16 %v1671, %v1669
          %v1730 = vpack.c.b16 %v1672, %v1670
          %v1731 = vpack.c.b16 %v1675, %v1673
          %v1732 = vpack.c.b16 %v1676, %v1674
          %v1733 = vpack.c.b16 %v1679, %v1677
          %v1734 = vpack.c.b16 %v1680, %v1678
          %v1735 = vpack.c.b16 %v1683, %v1681
          %v1736 = vpack.c.b16 %v1684, %v1682
          %v1737 = vpack.c.b16 %v1687, %v1685
          %v1738 = vpack.c.b16 %v1688, %v1686
          %v1739 = vpack.c.b16 %v1691, %v1689
          %v1740 = vpack.c.b16 %v1692, %v1690
          %v1741 = vpack.c.b16 %v1695, %v1693
          %v1742 = vpack.c.b16 %v1696, %v1694
          %v1743 = vpack.c.b16 %v1699, %v1697
          %v1744 = vpack.c.b16 %v1700, %v1698
          %v1745 = vpack.c.b16 %v1703, %v1701
          %v1746 = vpack.c.b16 %v1704, %v1702
          %v1747 = vpack.c.b16 %v1707, %v1705
          %v1748 = vpack.c.b16 %v1708, %v1706
          %v1749 = vpack.c.b16 %v1711, %v1709
          %v1750 = vpack.c.b16 %v1712, %v1710
          %v1751 = vpack.c.b16 %v1715, %v1713
          %v1752 = vpack.c.b16 %v1716, %v1714
          %v1753 = vpack.c.b16 %v1719, %v1717
          %v1754 = vpack.c.b16 %v1720, %v1718
          %v1755 = vpack.c.b16 %v1723, %v1721
          %v1756 = vpack.c.b16 %v1724, %v1722
          %1789 = vmatprep.subr.bf16.mxu0 %v1726
          %1790 = vmatpush1.bf16.msra.mxu0 %v1725
          %1791 = vmatprep.subr.bf16.mxu0 %v1728
          %1792 = vmatpush1.bf16.msra.mxu0 %v1727
          %1793 = vmatprep.subr.bf16.mxu0 %v1730
          %1794 = vmatpush1.bf16.msra.mxu0 %v1729
          %1795 = vmatprep.subr.bf16.mxu0 %v1732
          %1796 = vmatpush1.bf16.msra.mxu0 %v1731
          %1797 = vmatprep.subr.bf16.mxu0 %v1734
          %1798 = vmatpush1.bf16.msra.mxu0 %v1733
          %1799 = vmatprep.subr.bf16.mxu0 %v1736
          %1800 = vmatpush1.bf16.msra.mxu0 %v1735
          %1801 = vmatprep.subr.bf16.mxu0 %v1738
          %1802 = vmatpush1.bf16.msra.mxu0 %v1737
          %1803 = vmatprep.subr.bf16.mxu0 %v1740
          %1804 = vmatpush1.bf16.msra.mxu0 %v1739
          %1805 = vmatprep.subr.bf16.mxu0 %v1742
          %1806 = vmatpush1.bf16.msra.mxu0 %v1741
          %1807 = vmatprep.subr.bf16.mxu0 %v1744
          %1808 = vmatpush1.bf16.msra.mxu0 %v1743
          %1809 = vmatprep.subr.bf16.mxu0 %v1746
          %1810 = vmatpush1.bf16.msra.mxu0 %v1745
          %1811 = vmatprep.subr.bf16.mxu0 %v1748
          %1812 = vmatpush1.bf16.msra.mxu0 %v1747
          %1813 = vmatprep.subr.bf16.mxu0 %v1750
          %1814 = vmatpush1.bf16.msra.mxu0 %v1749
          %1815 = vmatprep.subr.bf16.mxu0 %v1752
          %1816 = vmatpush1.bf16.msra.mxu0 %v1751
          %1817 = vmatprep.subr.bf16.mxu0 %v1754
          %1818 = vmatpush1.bf16.msra.mxu0 %v1753
          %1819 = vmatprep.subr.bf16.mxu0 %v1756
          %1820 = vmatpush1.bf16.msra.mxu0 %v1755
          %1821 = vmatprep.mubr.bf16.mxu0 %v1574
          %1822 = vmatmul.mubr.bf16.gmra.mrb[0].mxu0 %v1573
          %v1823 = vpop.f32.mrb[0].mxu0
          %v1824 = vadd.f32 %v1624, %v1823
          %v1825 = vpop.f32.mrb[0].mxu0
          %v1826 = vadd.f32 %v1628, %v1825
          %v1827 = vpop.f32.mrb[0].mxu0
          %v1828 = vadd.f32 %v1624, %v1827
          %v1829 = vpop.f32.mrb[0].mxu0
          %v1830 = vadd.f32 %v1628, %v1829
          %1831 = vmatprep.mubr.bf16.mxu0 %v1576
          %1832 = vmatmul.mubr.bf16.gmra.mrb[0].mxu0 %v1575
          %v1833 = vpop.f32.mrb[0].mxu0
          %v1834 = vadd.f32 %v1624, %v1833
          %v1835 = vpop.f32.mrb[0].mxu0
          %v1836 = vadd.f32 %v1628, %v1835
          %v1837 = vpop.f32.mrb[0].mxu0
          %v1838 = vadd.f32 %v1624, %v1837
          %v1839 = vpop.f32.mrb[0].mxu0
          %v1840 = vadd.f32 %v1628, %v1839
          %1841 = vmatprep.mubr.bf16.mxu0 %v1578
          %1842 = vmatmul.mubr.bf16.gmra.mrb[0].mxu0 %v1577
          %v1843 = vpop.f32.mrb[0].mxu0
          %v1844 = vadd.f32 %v1624, %v1843
          %v1845 = vpop.f32.mrb[0].mxu0
          %v1846 = vadd.f32 %v1628, %v1845
          %v1847 = vpop.f32.mrb[0].mxu0
          %v1848 = vadd.f32 %v1624, %v1847
          %v1849 = vpop.f32.mrb[0].mxu0
          %v1850 = vadd.f32 %v1628, %v1849
          %1851 = vmatprep.mubr.bf16.mxu0 %v1580
          %1852 = vmatmul.mubr.bf16.gmra.mrb[0].mxu0 %v1579
          %v1853 = vpop.f32.mrb[0].mxu0
          %v1854 = vadd.f32 %v1624, %v1853
          %v1855 = vpop.f32.mrb[0].mxu0
          %v1856 = vadd.f32 %v1628, %v1855
          %v1857 = vpop.f32.mrb[0].mxu0
          %v1858 = vadd.f32 %v1624, %v1857
          %v1859 = vpop.f32.mrb[0].mxu0
          %v1860 = vadd.f32 %v1628, %v1859
          %1861 = vmatprep.mubr.bf16.mxu0 %v1582
          %1862 = vmatmul.mubr.bf16.gmra.mrb[0].mxu0 %v1581
          %v1863 = vpop.f32.mrb[0].mxu0
          %v1864 = vadd.f32 %v1624, %v1863
          %v1865 = vpop.f32.mrb[0].mxu0
          %v1866 = vadd.f32 %v1628, %v1865
          %v1867 = vpop.f32.mrb[0].mxu0
          %v1868 = vadd.f32 %v1624, %v1867
          %v1869 = vpop.f32.mrb[0].mxu0
          %v1870 = vadd.f32 %v1628, %v1869
          %1871 = vmatprep.mubr.bf16.mxu0 %v1584
          %1872 = vmatmul.mubr.bf16.gmra.mrb[0].mxu0 %v1583
          %v1873 = vpop.f32.mrb[0].mxu0
          %v1874 = vadd.f32 %v1624, %v1873
          %v1875 = vpop.f32.mrb[0].mxu0
          %v1876 = vadd.f32 %v1628, %v1875
          %v1877 = vpop.f32.mrb[0].mxu0
          %v1878 = vadd.f32 %v1624, %v1877
          %v1879 = vpop.f32.mrb[0].mxu0
          %v1880 = vadd.f32 %v1628, %v1879
          %1881 = vmatprep.mubr.bf16.mxu0 %v1586
          %1882 = vmatmul.mubr.bf16.gmra.mrb[0].mxu0 %v1585
          %v1883 = vpop.f32.mrb[0].mxu0
          %v1884 = vadd.f32 %v1624, %v1883
          %v1885 = vpop.f32.mrb[0].mxu0
          %v1886 = vadd.f32 %v1628, %v1885
          %v1887 = vpop.f32.mrb[0].mxu0
          %v1888 = vadd.f32 %v1624, %v1887
          %v1889 = vpop.f32.mrb[0].mxu0
          %v1890 = vadd.f32 %v1628, %v1889
          %1891 = vmatprep.mubr.bf16.mxu0 %v1588
          %1892 = vmatmul.mubr.bf16.gmra.mrb[0].mxu0 %v1587
          %v1893 = vpop.f32.mrb[0].mxu0
          %v1894 = vadd.f32 %v1624, %v1893
          %v1895 = vpop.f32.mrb[0].mxu0
          %v1896 = vadd.f32 %v1628, %v1895
          %v1897 = vpop.f32.mrb[0].mxu0
          %v1898 = vadd.f32 %v1624, %v1897
          %v1899 = vpop.f32.mrb[0].mxu0
          %v1900 = vadd.f32 %v1628, %v1899
          %1901 = vdwg.mxu0
          %v1902 = vmax.f32 %v1824, 0.0
          %v1903 = vmax.f32 %v1826, 0.0
          %v1904 = vmax.f32 %v1828, 0.0
          %v1905 = vmax.f32 %v1830, 0.0
          %v1906 = vmax.f32 %v1834, 0.0
          %v1907 = vmax.f32 %v1836, 0.0
          %v1908 = vmax.f32 %v1838, 0.0
          %v1909 = vmax.f32 %v1840, 0.0
          %v1910 = vmax.f32 %v1844, 0.0
          %v1911 = vmax.f32 %v1846, 0.0
          %v1912 = vmax.f32 %v1848, 0.0
          %v1913 = vmax.f32 %v1850, 0.0
          %v1914 = vmax.f32 %v1854, 0.0
          %v1915 = vmax.f32 %v1856, 0.0
          %v1916 = vmax.f32 %v1858, 0.0
          %v1917 = vmax.f32 %v1860, 0.0
          %v1918 = vmax.f32 %v1864, 0.0
          %v1919 = vmax.f32 %v1866, 0.0
          %v1920 = vmax.f32 %v1868, 0.0
          %v1921 = vmax.f32 %v1870, 0.0
          %v1922 = vmax.f32 %v1874, 0.0
          %v1923 = vmax.f32 %v1876, 0.0
          %v1924 = vmax.f32 %v1878, 0.0
          %v1925 = vmax.f32 %v1880, 0.0
          %v1926 = vmax.f32 %v1884, 0.0
          %v1927 = vmax.f32 %v1886, 0.0
          %v1928 = vmax.f32 %v1888, 0.0
          %v1929 = vmax.f32 %v1890, 0.0
          %v1930 = vmax.f32 %v1894, 0.0
          %v1931 = vmax.f32 %v1896, 0.0
          %v1932 = vmax.f32 %v1898, 0.0
          %v1933 = vmax.f32 %v1900, 0.0
          %v1934 = vpack.c.bf16 %v1904, %v1902
          %v1935 = vpack.c.bf16 %v1905, %v1903
          %v1936 = vpack.c.bf16 %v1908, %v1906
          %v1937 = vpack.c.bf16 %v1909, %v1907
          %v1938 = vpack.c.bf16 %v1912, %v1910
          %v1939 = vpack.c.bf16 %v1913, %v1911
          %v1940 = vpack.c.bf16 %v1916, %v1914
          %v1941 = vpack.c.bf16 %v1917, %v1915
          %v1942 = vpack.c.bf16 %v1920, %v1918
          %v1943 = vpack.c.bf16 %v1921, %v1919
          %v1944 = vpack.c.bf16 %v1924, %v1922
          %v1945 = vpack.c.bf16 %v1925, %v1923
          %v1946 = vpack.c.bf16 %v1928, %v1926
          %v1947 = vpack.c.bf16 %v1929, %v1927
          %v1948 = vpack.c.bf16 %v1932, %v1930
          %v1949 = vpack.c.bf16 %v1933, %v1931
          %v1950 = vld [vmem:[%s10] sm:$0xf]
          %v1951 = vld [vmem:[%s10 + $0x4] sm:$0xf]
          %v1952 = vld [vmem:[%s10 + $0x8] sm:$0xf]
          %v1953 = vld [vmem:[%s10 + $0xc] sm:$0xf]
          %v1954 = vld [vmem:[%s10 + $0x10] sm:$0xf]
          %v1955 = vld [vmem:[%s10 + $0x14] sm:$0xf]
          %v1956 = vld [vmem:[%s10 + $0x18] sm:$0xf]
          %v1957 = vld [vmem:[%s10 + $0x1c] sm:$0xf]
          %v1958 = vld [vmem:[%s10 + $0x20] sm:$0xf]
          %v1959 = vld [vmem:[%s10 + $0x24] sm:$0xf]
          %v1960 = vld [vmem:[%s10 + $0x28] sm:$0xf]
          %v1961 = vld [vmem:[%s10 + $0x2c] sm:$0xf]
          %v1962 = vld [vmem:[%s10 + $0x30] sm:$0xf]
          %v1963 = vld [vmem:[%s10 + $0x34] sm:$0xf]
          %v1964 = vld [vmem:[%s10 + $0x38] sm:$0xf]
          %v1965 = vld [vmem:[%s10 + $0x3c] sm:$0xf]
          %v1966 = vld [vmem:[%s10 + $0x40] sm:$0xf]
          %v1967 = vld [vmem:[%s10 + $0x44] sm:$0xf]
          %v1968 = vld [vmem:[%s10 + $0x48] sm:$0xf]
          %v1969 = vld [vmem:[%s10 + $0x4c] sm:$0xf]
          %v1970 = vld [vmem:[%s10 + $0x50] sm:$0xf]
          %v1971 = vld [vmem:[%s10 + $0x54] sm:$0xf]
          %v1972 = vld [vmem:[%s10 + $0x58] sm:$0xf]
          %v1973 = vld [vmem:[%s10 + $0x5c] sm:$0xf]
          %v1974 = vld [vmem:[%s10 + $0x60] sm:$0xf]
          %v1975 = vld [vmem:[%s10 + $0x64] sm:$0xf]
          %v1976 = vld [vmem:[%s10 + $0x68] sm:$0xf]
          %v1977 = vld [vmem:[%s10 + $0x6c] sm:$0xf]
          %v1978 = vld [vmem:[%s10 + $0x70] sm:$0xf]
          %v1979 = vld [vmem:[%s10 + $0x74] sm:$0xf]
          %v1980 = vld [vmem:[%s10 + $0x78] sm:$0xf]
          %v1981 = vld [vmem:[%s10 + $0x7c] sm:$0xf]
          %v1982 = vld [vmem:[%s11] sm:$0x1]
          %v1984 = vlaneseq
          %v1985 = vshrl.u32 %v1984, 7
          %v1986 = vsub.s32 0, %v1985
          %v1987 = vrot.slane %v1982, %v1986
          %v2021 = vunpack.c.l.b16 %v1950
          %v2022 = vunpack.c.l.b16 %v1951
          %v2023 = vunpack.c.l.b16 %v1952
          %v2024 = vunpack.c.l.b16 %v1953
          %v2025 = vunpack.c.l.b16 %v1954
          %v2026 = vunpack.c.l.b16 %v1955
          %v2027 = vunpack.c.l.b16 %v1956
          %v2028 = vunpack.c.l.b16 %v1957
          %v2029 = vunpack.c.l.b16 %v1958
          %v2030 = vunpack.c.l.b16 %v1959
          %v2031 = vunpack.c.l.b16 %v1960
          %v2032 = vunpack.c.l.b16 %v1961
          %v2033 = vunpack.c.l.b16 %v1962
          %v2034 = vunpack.c.l.b16 %v1963
          %v2035 = vunpack.c.l.b16 %v1964
          %v2036 = vunpack.c.l.b16 %v1965
          %v2037 = vunpack.c.l.b16 %v1966
          %v2038 = vunpack.c.l.b16 %v1967
          %v2039 = vunpack.c.l.b16 %v1968
          %v2040 = vunpack.c.l.b16 %v1969
          %v2041 = vunpack.c.l.b16 %v1970
          %v2042 = vunpack.c.l.b16 %v1971
          %v2043 = vunpack.c.l.b16 %v1972
          %v2044 = vunpack.c.l.b16 %v1973
          %v2045 = vunpack.c.l.b16 %v1974
          %v2046 = vunpack.c.l.b16 %v1975
          %v2047 = vunpack.c.l.b16 %v1976
          %v2048 = vunpack.c.l.b16 %v1977
          %v2049 = vunpack.c.l.b16 %v1978
          %v2050 = vunpack.c.l.b16 %v1979
          %v2051 = vunpack.c.l.b16 %v1980
          %v2052 = vunpack.c.l.b16 %v1981
          %v2053 = vpack.c.b16 %v2022, %v2021
          %v2054 = vpack.c.b16 %v2024, %v2023
          %v2055 = vpack.c.b16 %v2026, %v2025
          %v2056 = vpack.c.b16 %v2028, %v2027
          %v2057 = vpack.c.b16 %v2030, %v2029
          %v2058 = vpack.c.b16 %v2032, %v2031
          %v2059 = vpack.c.b16 %v2034, %v2033
          %v2060 = vpack.c.b16 %v2036, %v2035
          %v2061 = vpack.c.b16 %v2038, %v2037
          %v2062 = vpack.c.b16 %v2040, %v2039
          %v2063 = vpack.c.b16 %v2042, %v2041
          %v2064 = vpack.c.b16 %v2044, %v2043
          %v2065 = vpack.c.b16 %v2046, %v2045
          %v2066 = vpack.c.b16 %v2048, %v2047
          %v2067 = vpack.c.b16 %v2050, %v2049
          %v2068 = vpack.c.b16 %v2052, %v2051
          %2085 = vmatprep.subr.bf16.mxu0 0
          %2086 = vmatpush1.bf16.msra.mxu0 %v2053
          %2087 = vmatprep.subr.bf16.mxu0 0
          %2088 = vmatpush1.bf16.msra.mxu0 %v2054
          %2089 = vmatprep.subr.bf16.mxu0 0
          %2090 = vmatpush1.bf16.msra.mxu0 %v2055
          %2091 = vmatprep.subr.bf16.mxu0 0
          %2092 = vmatpush1.bf16.msra.mxu0 %v2056
          %2093 = vmatprep.subr.bf16.mxu0 0
          %2094 = vmatpush1.bf16.msra.mxu0 %v2057
          %2095 = vmatprep.subr.bf16.mxu0 0
          %2096 = vmatpush1.bf16.msra.mxu0 %v2058
          %2097 = vmatprep.subr.bf16.mxu0 0
          %2098 = vmatpush1.bf16.msra.mxu0 %v2059
          %2099 = vmatprep.subr.bf16.mxu0 0
          %2100 = vmatpush1.bf16.msra.mxu0 %v2060
          %2101 = vmatprep.subr.bf16.mxu0 0
          %2102 = vmatpush1.bf16.msra.mxu0 %v2061
          %2103 = vmatprep.subr.bf16.mxu0 0
          %2104 = vmatpush1.bf16.msra.mxu0 %v2062
          %2105 = vmatprep.subr.bf16.mxu0 0
          %2106 = vmatpush1.bf16.msra.mxu0 %v2063
          %2107 = vmatprep.subr.bf16.mxu0 0
          %2108 = vmatpush1.bf16.msra.mxu0 %v2064
          %2109 = vmatprep.subr.bf16.mxu0 0
          %2110 = vmatpush1.bf16.msra.mxu0 %v2065
          %2111 = vmatprep.subr.bf16.mxu0 0
          %2112 = vmatpush1.bf16.msra.mxu0 %v2066
          %2113 = vmatprep.subr.bf16.mxu0 0
          %2114 = vmatpush1.bf16.msra.mxu0 %v2067
          %2115 = vmatprep.subr.bf16.mxu0 0
          %2116 = vmatpush1.bf16.msra.mxu0 %v2068
          %2117 = vmatprep.mubr.bf16.mxu0 %v1935
          %2118 = vmatmul.mubr.bf16.gmra.mrb[0].mxu0 %v1934
          %v2119 = vpop.f32.mrb[0].mxu0
          %v2120 = vadd.f32 %v1987, %v2119
          %v2121 = vpop.f32.mrb[0].mxu0
          %v2122 = vpop.f32.mrb[0].mxu0
          %v2123 = vadd.f32 %v1987, %v2122
          %v2124 = vpop.f32.mrb[0].mxu0
          %2125 = vmatprep.mubr.bf16.mxu0 %v1937
          %2126 = vmatmul.mubr.bf16.gmra.mrb[0].mxu0 %v1936
          %v2127 = vpop.f32.mrb[0].mxu0
          %v2128 = vadd.f32 %v1987, %v2127
          %v2129 = vpop.f32.mrb[0].mxu0
          %v2130 = vpop.f32.mrb[0].mxu0
          %v2131 = vadd.f32 %v1987, %v2130
          %v2132 = vpop.f32.mrb[0].mxu0
          %2133 = vmatprep.mubr.bf16.mxu0 %v1939
          %2134 = vmatmul.mubr.bf16.gmra.mrb[0].mxu0 %v1938
          %v2135 = vpop.f32.mrb[0].mxu0
          %v2136 = vadd.f32 %v1987, %v2135
          %v2137 = vpop.f32.mrb[0].mxu0
          %v2138 = vpop.f32.mrb[0].mxu0
          %v2139 = vadd.f32 %v1987, %v2138
          %v2140 = vpop.f32.mrb[0].mxu0
          %2141 = vmatprep.mubr.bf16.mxu0 %v1941
          %2142 = vmatmul.mubr.bf16.gmra.mrb[0].mxu0 %v1940
          %v2143 = vpop.f32.mrb[0].mxu0
          %v2144 = vadd.f32 %v1987, %v2143
          %v2145 = vpop.f32.mrb[0].mxu0
          %v2146 = vpop.f32.mrb[0].mxu0
          %v2147 = vadd.f32 %v1987, %v2146
          %v2148 = vpop.f32.mrb[0].mxu0
          %2149 = vmatprep.mubr.bf16.mxu0 %v1943
          %2150 = vmatmul.mubr.bf16.gmra.mrb[0].mxu0 %v1942
          %v2151 = vpop.f32.mrb[0].mxu0
          %v2152 = vadd.f32 %v1987, %v2151
          %v2153 = vpop.f32.mrb[0].mxu0
          %v2154 = vpop.f32.mrb[0].mxu0
          %v2155 = vadd.f32 %v1987, %v2154
          %v2156 = vpop.f32.mrb[0].mxu0
          %2157 = vmatprep.mubr.bf16.mxu0 %v1945
          %2158 = vmatmul.mubr.bf16.gmra.mrb[0].mxu0 %v1944
          %v2159 = vpop.f32.mrb[0].mxu0
          %v2160 = vadd.f32 %v1987, %v2159
          %v2161 = vpop.f32.mrb[0].mxu0
          %v2162 = vpop.f32.mrb[0].mxu0
          %v2163 = vadd.f32 %v1987, %v2162
          %v2164 = vpop.f32.mrb[0].mxu0
          %2165 = vmatprep.mubr.bf16.mxu0 %v1947
          %2166 = vmatmul.mubr.bf16.gmra.mrb[0].mxu0 %v1946
          %v2167 = vpop.f32.mrb[0].mxu0
          %v2168 = vadd.f32 %v1987, %v2167
          %v2169 = vpop.f32.mrb[0].mxu0
          %v2170 = vpop.f32.mrb[0].mxu0
          %v2171 = vadd.f32 %v1987, %v2170
          %v2172 = vpop.f32.mrb[0].mxu0
          %2173 = vmatprep.mubr.bf16.mxu0 %v1949
          %2174 = vmatmul.mubr.bf16.gmra.mrb[0].mxu0 %v1948
          %v2175 = vpop.f32.mrb[0].mxu0
          %v2176 = vadd.f32 %v1987, %v2175
          %v2177 = vpop.f32.mrb[0].mxu0
          %v2178 = vpop.f32.mrb[0].mxu0
          %v2179 = vadd.f32 %v1987, %v2178
          %v2180 = vpop.f32.mrb[0].mxu0
          %2181 = vdwg.mxu0
          %v2182 = vmax.f32 %v2120, 0.0
          %v2183 = vmax.f32 %v2123, 0.0
          %v2184 = vmax.f32 %v2128, 0.0
          %v2185 = vmax.f32 %v2131, 0.0
          %v2186 = vmax.f32 %v2136, 0.0
          %v2187 = vmax.f32 %v2139, 0.0
          %v2188 = vmax.f32 %v2144, 0.0
          %v2189 = vmax.f32 %v2147, 0.0
          %v2190 = vmax.f32 %v2152, 0.0
          %v2191 = vmax.f32 %v2155, 0.0
          %v2192 = vmax.f32 %v2160, 0.0
          %v2193 = vmax.f32 %v2163, 0.0
          %v2194 = vmax.f32 %v2168, 0.0
          %v2195 = vmax.f32 %v2171, 0.0
          %v2196 = vmax.f32 %v2176, 0.0
          %v2197 = vmax.f32 %v2179, 0.0
          %v2198 = vpack.c.bf16 %v2183, %v2182
          %v2199 = vpack.c.bf16 %v2185, %v2184
          %v2200 = vpack.c.bf16 %v2187, %v2186
          %v2201 = vpack.c.bf16 %v2189, %v2188
          %v2202 = vpack.c.bf16 %v2191, %v2190
          %v2203 = vpack.c.bf16 %v2193, %v2192
          %v2204 = vpack.c.bf16 %v2195, %v2194
          %v2205 = vpack.c.bf16 %v2197, %v2196
          %v2206 = vld [vmem:[%s12] sm:$0xf]
          %v2207 = vld [vmem:[%s12 + $0x4] sm:$0xf]
          %v2208 = vld [vmem:[%s12 + $0x8] sm:$0xf]
          %v2209 = vld [vmem:[%s12 + $0xc] sm:$0xf]
          %v2210 = vld [vmem:[%s12 + $0x10] sm:$0xf]
          %v2211 = vld [vmem:[%s12 + $0x14] sm:$0xf]
          %v2212 = vld [vmem:[%s12 + $0x18] sm:$0xf]
          %v2213 = vld [vmem:[%s12 + $0x1c] sm:$0xf]
          %v2214 = vld [vmem:[%s12 + $0x20] sm:$0xf]
          %v2215 = vld [vmem:[%s12 + $0x24] sm:$0xf]
          %v2216 = vld [vmem:[%s12 + $0x28] sm:$0xf]
          %v2217 = vld [vmem:[%s12 + $0x2c] sm:$0xf]
          %v2218 = vld [vmem:[%s12 + $0x30] sm:$0xf]
          %v2219 = vld [vmem:[%s12 + $0x34] sm:$0xf]
          %v2220 = vld [vmem:[%s12 + $0x38] sm:$0xf]
          %v2221 = vld [vmem:[%s12 + $0x3c] sm:$0xf]
          %v2222 = vld [vmem:[%s13] sm:$0x1]
          %v2224 = vlaneseq
          %v2225 = vshrl.u32 %v2224, 7
          %v2226 = vsub.s32 0, %v2225
          %v2227 = vrot.slane %v2222, %v2226
          %v2245 = vunpack.c.l.b16 %v2206
          %v2246 = vunpack.c.l.b16 %v2207
          %v2247 = vunpack.c.l.b16 %v2208
          %v2248 = vunpack.c.l.b16 %v2209
          %v2249 = vunpack.c.l.b16 %v2210
          %v2250 = vunpack.c.l.b16 %v2211
          %v2251 = vunpack.c.l.b16 %v2212
          %v2252 = vunpack.c.l.b16 %v2213
          %v2253 = vunpack.c.l.b16 %v2214
          %v2254 = vunpack.c.l.b16 %v2215
          %v2255 = vunpack.c.l.b16 %v2216
          %v2256 = vunpack.c.l.b16 %v2217
          %v2257 = vunpack.c.l.b16 %v2218
          %v2258 = vunpack.c.l.b16 %v2219
          %v2259 = vunpack.c.l.b16 %v2220
          %v2260 = vunpack.c.l.b16 %v2221
          %v2261 = vpack.c.b16 %v2246, %v2245
          %v2262 = vpack.c.b16 %v2248, %v2247
          %v2263 = vpack.c.b16 %v2250, %v2249
          %v2264 = vpack.c.b16 %v2252, %v2251
          %v2265 = vpack.c.b16 %v2254, %v2253
          %v2266 = vpack.c.b16 %v2256, %v2255
          %v2267 = vpack.c.b16 %v2258, %v2257
          %v2268 = vpack.c.b16 %v2260, %v2259
          %2277 = vmatprep.subr.bf16.mxu0 0
          %2278 = vmatpush1.bf16.msra.mxu0 %v2261
          %2279 = vmatprep.subr.bf16.mxu0 0
          %2280 = vmatpush1.bf16.msra.mxu0 %v2262
          %2281 = vmatprep.subr.bf16.mxu0 0
          %2282 = vmatpush1.bf16.msra.mxu0 %v2263
          %2283 = vmatprep.subr.bf16.mxu0 0
          %2284 = vmatpush1.bf16.msra.mxu0 %v2264
          %2285 = vmatprep.subr.bf16.mxu0 0
          %2286 = vmatpush1.bf16.msra.mxu0 %v2265
          %2287 = vmatprep.subr.bf16.mxu0 0
          %2288 = vmatpush1.bf16.msra.mxu0 %v2266
          %2289 = vmatprep.subr.bf16.mxu0 0
          %2290 = vmatpush1.bf16.msra.mxu0 %v2267
          %2291 = vmatprep.subr.bf16.mxu0 0
          %2292 = vmatpush1.bf16.msra.mxu0 %v2268
          %2293 = vmatprep.subr.bf16.mxu0 0
          %2294 = vmatpush1.bf16.msra.mxu0 0
          %2295 = vmatprep.subr.bf16.mxu0 0
          %2296 = vmatpush1.bf16.msra.mxu0 0
          %2297 = vmatprep.subr.bf16.mxu0 0
          %2298 = vmatpush1.bf16.msra.mxu0 0
          %2299 = vmatprep.subr.bf16.mxu0 0
          %2300 = vmatpush1.bf16.msra.mxu0 0
          %2301 = vmatprep.subr.bf16.mxu0 0
          %2302 = vmatpush1.bf16.msra.mxu0 0
          %2303 = vmatprep.subr.bf16.mxu0 0
          %2304 = vmatpush1.bf16.msra.mxu0 0
          %2305 = vmatprep.subr.bf16.mxu0 0
          %2306 = vmatpush1.bf16.msra.mxu0 0
          %2307 = vmatprep.subr.bf16.mxu0 0
          %2308 = vmatpush1.bf16.msra.mxu0 0
          %2309 = vmatprep.mubr.bf16.mxu0 0
          %2310 = vmatmul.mubr.bf16.gmra.mrb[0].mxu0 %v2198
          %v2311 = vpop.f32.mrb[0].mxu0
          %v2312 = vadd.f32 %v2227, %v2311
          %v2313 = vpop.f32.mrb[0].mxu0
          %v2314 = vpop.f32.mrb[0].mxu0
          %v2315 = vadd.f32 %v2227, %v2314
          %v2316 = vpop.f32.mrb[0].mxu0
          %2317 = vmatprep.mubr.bf16.mxu0 0
          %2318 = vmatmul.mubr.bf16.gmra.mrb[0].mxu0 %v2199
          %v2319 = vpop.f32.mrb[0].mxu0
          %v2320 = vadd.f32 %v2227, %v2319
          %v2321 = vpop.f32.mrb[0].mxu0
          %v2322 = vpop.f32.mrb[0].mxu0
          %v2323 = vadd.f32 %v2227, %v2322
          %v2324 = vpop.f32.mrb[0].mxu0
          %2325 = vmatprep.mubr.bf16.mxu0 0
          %2326 = vmatmul.mubr.bf16.gmra.mrb[0].mxu0 %v2200
          %v2327 = vpop.f32.mrb[0].mxu0
          %v2328 = vadd.f32 %v2227, %v2327
          %v2329 = vpop.f32.mrb[0].mxu0
          %v2330 = vpop.f32.mrb[0].mxu0
          %v2331 = vadd.f32 %v2227, %v2330
          %v2332 = vpop.f32.mrb[0].mxu0
          %2333 = vmatprep.mubr.bf16.mxu0 0
          %2334 = vmatmul.mubr.bf16.gmra.mrb[0].mxu0 %v2201
          %v2335 = vpop.f32.mrb[0].mxu0
          %v2336 = vadd.f32 %v2227, %v2335
          %v2337 = vpop.f32.mrb[0].mxu0
          %v2338 = vpop.f32.mrb[0].mxu0
          %v2339 = vadd.f32 %v2227, %v2338
          %v2340 = vpop.f32.mrb[0].mxu0
          %2341 = vmatprep.mubr.bf16.mxu0 0
          %2342 = vmatmul.mubr.bf16.gmra.mrb[0].mxu0 %v2202
          %v2343 = vpop.f32.mrb[0].mxu0
          %v2344 = vadd.f32 %v2227, %v2343
          %v2345 = vpop.f32.mrb[0].mxu0
          %v2346 = vpop.f32.mrb[0].mxu0
          %v2347 = vadd.f32 %v2227, %v2346
          %v2348 = vpop.f32.mrb[0].mxu0
          %2349 = vmatprep.mubr.bf16.mxu0 0
          %2350 = vmatmul.mubr.bf16.gmra.mrb[0].mxu0 %v2203
          %v2351 = vpop.f32.mrb[0].mxu0
          %v2352 = vadd.f32 %v2227, %v2351
          %v2353 = vpop.f32.mrb[0].mxu0
          %v2354 = vpop.f32.mrb[0].mxu0
          %v2355 = vadd.f32 %v2227, %v2354
          %v2356 = vpop.f32.mrb[0].mxu0
          %2357 = vmatprep.mubr.bf16.mxu0 0
          %2358 = vmatmul.mubr.bf16.gmra.mrb[0].mxu0 %v2204
          %v2359 = vpop.f32.mrb[0].mxu0
          %v2360 = vadd.f32 %v2227, %v2359
          %v2361 = vpop.f32.mrb[0].mxu0
          %v2362 = vpop.f32.mrb[0].mxu0
          %v2363 = vadd.f32 %v2227, %v2362
          %v2364 = vpop.f32.mrb[0].mxu0
          %2365 = vmatprep.mubr.bf16.mxu0 0
          %2366 = vmatmul.mubr.bf16.gmra.mrb[0].mxu0 %v2205
          %v2367 = vpop.f32.mrb[0].mxu0
          %v2368 = vadd.f32 %v2227, %v2367
          %v2369 = vpop.f32.mrb[0].mxu0
          %v2370 = vpop.f32.mrb[0].mxu0
          %v2371 = vadd.f32 %v2227, %v2370
          %v2372 = vpop.f32.mrb[0].mxu0
          %2373 = vdwg.mxu0
          %v2374 = vmax.f32 %v2312, 0.0
          %v2375 = vmax.f32 %v2315, 0.0
          %v2376 = vmax.f32 %v2320, 0.0
          %v2377 = vmax.f32 %v2323, 0.0
          %v2378 = vmax.f32 %v2328, 0.0
          %v2379 = vmax.f32 %v2331, 0.0
          %v2380 = vmax.f32 %v2336, 0.0
          %v2381 = vmax.f32 %v2339, 0.0
          %v2382 = vmax.f32 %v2344, 0.0
          %v2383 = vmax.f32 %v2347, 0.0
          %v2384 = vmax.f32 %v2352, 0.0
          %v2385 = vmax.f32 %v2355, 0.0
          %v2386 = vmax.f32 %v2360, 0.0
          %v2387 = vmax.f32 %v2363, 0.0
          %v2388 = vmax.f32 %v2368, 0.0
          %v2389 = vmax.f32 %v2371, 0.0
          %v2390 = vpack.c.bf16 %v2375, %v2374
          %v2391 = vpack.c.bf16 %v2377, %v2376
          %v2392 = vpack.c.bf16 %v2379, %v2378
          %v2393 = vpack.c.bf16 %v2381, %v2380
          %v2394 = vpack.c.bf16 %v2383, %v2382
          %v2395 = vpack.c.bf16 %v2385, %v2384
          %v2396 = vpack.c.bf16 %v2387, %v2386
          %v2397 = vpack.c.bf16 %v2389, %v2388
          %v2398 = vld [vmem:[%s14] sm:$0xf]
          %v2399 = vld [vmem:[%s14 + $0x4] sm:$0xf]
          %v2400 = vld [vmem:[%s14 + $0x8] sm:$0xf]
          %v2401 = vld [vmem:[%s14 + $0xc] sm:$0xf]
          %v2402 = vld [vmem:[%s14 + $0x10] sm:$0xf]
          %v2403 = vld [vmem:[%s14 + $0x14] sm:$0xf]
          %v2404 = vld [vmem:[%s14 + $0x18] sm:$0xf]
          %v2405 = vld [vmem:[%s14 + $0x1c] sm:$0xf]
          %v2406 = vld [vmem:[%s15] sm:$0x1]
          %v2408 = vlaneseq
          %v2409 = vshrl.u32 %v2408, 7
          %v2410 = vsub.s32 0, %v2409
          %v2411 = vrot.slane %v2406, %v2410
          %v2421 = vunpack.c.l.b16 %v2398
          %v2422 = vunpack.c.l.b16 %v2399
          %v2423 = vunpack.c.l.b16 %v2400
          %v2424 = vunpack.c.l.b16 %v2401
          %v2425 = vunpack.c.l.b16 %v2402
          %v2426 = vunpack.c.l.b16 %v2403
          %v2427 = vunpack.c.l.b16 %v2404
          %v2428 = vunpack.c.l.b16 %v2405
          %v2429 = vpack.c.b16 %v2422, %v2421
          %v2430 = vpack.c.b16 %v2424, %v2423
          %v2431 = vpack.c.b16 %v2426, %v2425
          %v2432 = vpack.c.b16 %v2428, %v2427
          %v2438 = vsel %vm775, %v2390, 0
          %v2441 = vsel %vm775, %v2391, 0
          %v2444 = vsel %vm775, %v2392, 0
          %v2447 = vsel %vm775, %v2393, 0
          %v2450 = vsel %vm775, %v2394, 0
          %v2453 = vsel %vm775, %v2395, 0
          %v2456 = vsel %vm775, %v2396, 0
          %v2459 = vsel %vm775, %v2397, 0
          %2461 = vmatprep.subr.bf16.mxu0 0
          %2462 = vmatpush1.bf16.msra.mxu0 %v2429
          %2463 = vmatprep.subr.bf16.mxu0 0
          %2464 = vmatpush1.bf16.msra.mxu0 %v2430
          %2465 = vmatprep.subr.bf16.mxu0 0
          %2466 = vmatpush1.bf16.msra.mxu0 %v2431
          %2467 = vmatprep.subr.bf16.mxu0 0
          %2468 = vmatpush1.bf16.msra.mxu0 %v2432
          %2469 = vmatprep.subr.bf16.mxu0 0
          %2470 = vmatpush1.bf16.msra.mxu0 0
          %2471 = vmatprep.subr.bf16.mxu0 0
          %2472 = vmatpush1.bf16.msra.mxu0 0
          %2473 = vmatprep.subr.bf16.mxu0 0
          %2474 = vmatpush1.bf16.msra.mxu0 0
          %2475 = vmatprep.subr.bf16.mxu0 0
          %2476 = vmatpush1.bf16.msra.mxu0 0
          %2477 = vmatprep.subr.bf16.mxu0 0
          %2478 = vmatpush1.bf16.msra.mxu0 0
          %2479 = vmatprep.subr.bf16.mxu0 0
          %2480 = vmatpush1.bf16.msra.mxu0 0
          %2481 = vmatprep.subr.bf16.mxu0 0
          %2482 = vmatpush1.bf16.msra.mxu0 0
          %2483 = vmatprep.subr.bf16.mxu0 0
          %2484 = vmatpush1.bf16.msra.mxu0 0
          %2485 = vmatprep.subr.bf16.mxu0 0
          %2486 = vmatpush1.bf16.msra.mxu0 0
          %2487 = vmatprep.subr.bf16.mxu0 0
          %2488 = vmatpush1.bf16.msra.mxu0 0
          %2489 = vmatprep.subr.bf16.mxu0 0
          %2490 = vmatpush1.bf16.msra.mxu0 0
          %2491 = vmatprep.subr.bf16.mxu0 0
          %2492 = vmatpush1.bf16.msra.mxu0 0
          %2493 = vmatprep.mubr.bf16.mxu0 0
          %2494 = vmatmul.mubr.bf16.gmra.mrb[0].mxu0 %v2438
          %v2495 = vpop.f32.mrb[0].mxu0
          %v2496 = vadd.f32 %v2411, %v2495
          %v2497 = vpop.f32.mrb[0].mxu0
          %v2498 = vpop.f32.mrb[0].mxu0
          %v2499 = vadd.f32 %v2411, %v2498
          %v2500 = vpop.f32.mrb[0].mxu0
          %2501 = vmatprep.mubr.bf16.mxu0 0
          %2502 = vmatmul.mubr.bf16.gmra.mrb[0].mxu0 %v2441
          %v2503 = vpop.f32.mrb[0].mxu0
          %v2504 = vadd.f32 %v2411, %v2503
          %v2505 = vpop.f32.mrb[0].mxu0
          %v2506 = vpop.f32.mrb[0].mxu0
          %v2507 = vadd.f32 %v2411, %v2506
          %v2508 = vpop.f32.mrb[0].mxu0
          %2509 = vmatprep.mubr.bf16.mxu0 0
          %2510 = vmatmul.mubr.bf16.gmra.mrb[0].mxu0 %v2444
          %v2511 = vpop.f32.mrb[0].mxu0
          %v2512 = vadd.f32 %v2411, %v2511
          %v2513 = vpop.f32.mrb[0].mxu0
          %v2514 = vpop.f32.mrb[0].mxu0
          %v2515 = vadd.f32 %v2411, %v2514
          %v2516 = vpop.f32.mrb[0].mxu0
          %2517 = vmatprep.mubr.bf16.mxu0 0
          %2518 = vmatmul.mubr.bf16.gmra.mrb[0].mxu0 %v2447
          %v2519 = vpop.f32.mrb[0].mxu0
          %v2520 = vadd.f32 %v2411, %v2519
          %v2521 = vpop.f32.mrb[0].mxu0
          %v2522 = vpop.f32.mrb[0].mxu0
          %v2523 = vadd.f32 %v2411, %v2522
          %v2524 = vpop.f32.mrb[0].mxu0
          %2525 = vmatprep.mubr.bf16.mxu0 0
          %2526 = vmatmul.mubr.bf16.gmra.mrb[0].mxu0 %v2450
          %v2527 = vpop.f32.mrb[0].mxu0
          %v2528 = vadd.f32 %v2411, %v2527
          %v2529 = vpop.f32.mrb[0].mxu0
          %v2530 = vpop.f32.mrb[0].mxu0
          %v2531 = vadd.f32 %v2411, %v2530
          %v2532 = vpop.f32.mrb[0].mxu0
          %2533 = vmatprep.mubr.bf16.mxu0 0
          %2534 = vmatmul.mubr.bf16.gmra.mrb[0].mxu0 %v2453
          %v2535 = vpop.f32.mrb[0].mxu0
          %v2536 = vadd.f32 %v2411, %v2535
          %v2537 = vpop.f32.mrb[0].mxu0
          %v2538 = vpop.f32.mrb[0].mxu0
          %v2539 = vadd.f32 %v2411, %v2538
          %v2540 = vpop.f32.mrb[0].mxu0
          %2541 = vmatprep.mubr.bf16.mxu0 0
          %2542 = vmatmul.mubr.bf16.gmra.mrb[0].mxu0 %v2456
          %v2543 = vpop.f32.mrb[0].mxu0
          %v2544 = vadd.f32 %v2411, %v2543
          %v2545 = vpop.f32.mrb[0].mxu0
          %v2546 = vpop.f32.mrb[0].mxu0
          %v2547 = vadd.f32 %v2411, %v2546
          %v2548 = vpop.f32.mrb[0].mxu0
          %2549 = vmatprep.mubr.bf16.mxu0 0
          %2550 = vmatmul.mubr.bf16.gmra.mrb[0].mxu0 %v2459
          %v2551 = vpop.f32.mrb[0].mxu0
          %v2552 = vadd.f32 %v2411, %v2551
          %v2553 = vpop.f32.mrb[0].mxu0
          %v2554 = vpop.f32.mrb[0].mxu0
          %v2555 = vadd.f32 %v2411, %v2554
          %v2556 = vpop.f32.mrb[0].mxu0
          %2557 = vdwg.mxu0
          %v2558 = vpack.c.bf16 %v2499, %v2496
          %v2559 = vpack.c.bf16 %v2507, %v2504
          %v2560 = vpack.c.bf16 %v2515, %v2512
          %v2561 = vpack.c.bf16 %v2523, %v2520
          %v2562 = vpack.c.bf16 %v2531, %v2528
          %v2563 = vpack.c.bf16 %v2539, %v2536
          %v2564 = vpack.c.bf16 %v2547, %v2544
          %v2565 = vpack.c.bf16 %v2555, %v2552
          %s2566 = smul.u32 %s1565, 128
          %v2575 = vunpack.c.l.b16 %v2558
          %v2576 = vunpack.c.h.b16 %v2558
          %v2577 = vunpack.c.l.b16 %v2559
          %v2578 = vunpack.c.h.b16 %v2559
          %v2579 = vunpack.c.l.b16 %v2560
          %v2580 = vunpack.c.h.b16 %v2560
          %v2581 = vunpack.c.l.b16 %v2561
          %v2582 = vunpack.c.h.b16 %v2561
          %v2583 = vunpack.c.l.b16 %v2562
          %v2584 = vunpack.c.h.b16 %v2562
          %v2585 = vunpack.c.l.b16 %v2563
          %v2586 = vunpack.c.h.b16 %v2563
          %v2587 = vunpack.c.l.b16 %v2564
          %v2588 = vunpack.c.h.b16 %v2564
          %v2589 = vunpack.c.l.b16 %v2565
          %v2590 = vunpack.c.h.b16 %v2565
          %v2591 = vpack.c.b16 %v2575, %v2575
          %v2592 = vpack.c.b16 %v2576, %v2576
          %v2593 = vpack.c.b16 %v2577, %v2577
          %v2594 = vpack.c.b16 %v2578, %v2578
          %v2595 = vpack.c.b16 %v2579, %v2579
          %v2596 = vpack.c.b16 %v2580, %v2580
          %v2597 = vpack.c.b16 %v2581, %v2581
          %v2598 = vpack.c.b16 %v2582, %v2582
          %v2599 = vpack.c.b16 %v2583, %v2583
          %v2600 = vpack.c.b16 %v2584, %v2584
          %v2601 = vpack.c.b16 %v2585, %v2585
          %v2602 = vpack.c.b16 %v2586, %v2586
          %v2603 = vpack.c.b16 %v2587, %v2587
          %v2604 = vpack.c.b16 %v2588, %v2588
          %v2605 = vpack.c.b16 %v2589, %v2589
          %v2606 = vpack.c.b16 %v2590, %v2590
          %s2623 = sshra.s32 %s2566, 3
          %s2624 = sand.u32 %s2566, 7
          %s2625 = smul.addr %s2623, 4
          %s2626 = scalar_lea.vmem %s549, %s2625
          %2627 = vst [vmem:[%s2626] sm:$0xf] %v2591
          %2628 = vst [vmem:[%s2626 + $0x4] sm:$0xf] %v2592
          %2629 = vst [vmem:[%s2626 + $0x8] sm:$0xf] %v2593
          %2630 = vst [vmem:[%s2626 + $0xc] sm:$0xf] %v2594
          %2631 = vst [vmem:[%s2626 + $0x10] sm:$0xf] %v2595
          %2632 = vst [vmem:[%s2626 + $0x14] sm:$0xf] %v2596
          %2633 = vst [vmem:[%s2626 + $0x18] sm:$0xf] %v2597
          %2634 = vst [vmem:[%s2626 + $0x1c] sm:$0xf] %v2598
          %2635 = vst [vmem:[%s2626 + $0x20] sm:$0xf] %v2599
          %2636 = vst [vmem:[%s2626 + $0x24] sm:$0xf] %v2600
          %2637 = vst [vmem:[%s2626 + $0x28] sm:$0xf] %v2601
          %2638 = vst [vmem:[%s2626 + $0x2c] sm:$0xf] %v2602
          %2639 = vst [vmem:[%s2626 + $0x30] sm:$0xf] %v2603
          %2640 = vst [vmem:[%s2626 + $0x34] sm:$0xf] %v2604
          %2641 = vst [vmem:[%s2626 + $0x38] sm:$0xf] %v2605
          %2642 = vst [vmem:[%s2626 + $0x3c] sm:$0xf] %v2606
        $region101: #{pointnet_forward.1} parent=95 // loop_footer
          %s1569 = sadd.s32 1, %s1565
        $region102: #{pointnet_forward.1} parent=95 // loop_footer_branch
          %1564 = sbr.rel target = $region98
        $region103: #{pointnet_forward.1} parent=95 // loop_exit
          _
      $region96: #{pointnet_forward.1} parent=83 // pred_fallthru
        _
      %p2643 = scmp.lt.s32.totalorder %s31, 1
      %s2644 = scalar_select %p2643, %s31, 1
      %s2645 = smul.addr %s2644, 48
      %s2646 = smul.addr %s2645, 4
      %s2647 = scalar_lea.vmem %s16, %s2646
      // Predicated region
      $region104: #{pointnet_forward.1} parent=83 // pred_check
        %p2648 = pneg %p400
      $region105: #{pointnet_forward.1} parent=83 // pred_check_branch
        %2650 = sbr.rel (%p2648) target = $region107
      $region106: #{pointnet_forward.1} parent=83 // pred_region
        _
      $region107: #{pointnet_forward.1} parent=83 // pred_fallthru
        _
    $region84: #{pointnet_forward.1} parent=5 // pred_fallthru
      _
    %p2651 = scmp.le.s32.totalorder 2, %s22
    // Predicated region
    $region108: #{pointnet_forward.1} parent=5 // pred_check
      %p2652 = pneg %p2651
    $region109: #{pointnet_forward.1} parent=5 // pred_check_branch
      %2654 = sbr.rel (%p2652) target = $region111
    $region110: #{pointnet_forward.1} parent=5 // pred_region
      %s2655 = ssub.s32 %s22, 2
      // Predicated region
      $region112: #{pointnet_forward.1} parent=110 // pred_check
        %p2656 = pneg %p406
      $region113: #{pointnet_forward.1} parent=110 // pred_check_branch
        %2658 = sbr.rel (%p2656) target = $region115
      $region114: #{pointnet_forward.1} parent=110 // pred_region
        %p2659 = scmp.lt.s32.totalorder %s33, 1
        %s2660 = scalar_select %p2659, %s33, 1
        %s2661 = smul.addr %s2660, 48
        %s2662 = smul.addr %s2661, 4
        %s2663 = scalar_lea.vmem %s16, %s2662
      $region115: #{pointnet_forward.1} parent=110 // pred_fallthru
        _
    $region111: #{pointnet_forward.1} parent=5 // pred_fallthru
      _
  $region6: #{pointnet_forward.1} parent=0 // loop_footer
    %s26 = sadd.s32 1, %s22
  $region7: #{pointnet_forward.1} parent=0 // loop_footer_branch
    %21 = sbr.rel target = $region3
  $region8: #{pointnet_forward.1} parent=0 // loop_exit
    _

</llo_original>
